<compile_context>
chip_gen: v5e
topology: v5e:2x2
jax: 0.10.0
libtpu: 0.0.40
codegen_flags: <defaults>
</compile_context>

<pallas_src>
import jax
import jax.numpy as jnp
from jax import lax
from jax.experimental import pallas as pl
from jax.experimental.pallas import tpu as pltpu

# ---------------------------------------------------------------------------
# Configuration (small, consistent with the module's __init__)
# ---------------------------------------------------------------------------
IN_CH = 3            # RGB input
ENC_DIM = 4          # encoder out_dim  (imnet_dim)
MULTI_SCALE = [2]    # len == 1
NL_DIM = ENC_DIM * len(MULTI_SCALE)          # non_local_attn_dim = 4
CK = ENC_DIM * 9                             # feat_unfold -> 36
DV = CK + NL_DIM                             # value dim     -> 40
K_IN = CK + 4                                # imnet_k in    -> 40
V_IN = DV + 4                                # imnet_v in    -> 44
Q_IN = DV                                    # imnet_q in    -> 40
HID = 32                                     # imnet hidden width
OUT_CH = 3                                   # RGB output
SOFTMAX_SCALE = 1.0
LOCAL_SIZE = 2                               # -> 4 key/value taps
TQ_MAX = 1024                                # query-tile upper bound (sweepable)


# ---------------------------------------------------------------------------
# Pallas kernel: fused imnet_k/imnet_v MLPs over all 4 taps, key/value
# modulation, 4-way online-softmax attention, local-ensemble query already
# pre-blended, then imnet_q.
# ---------------------------------------------------------------------------
def mcassr_kernel(query_ref, inpv_ref,
                  wkv1_ref, bkv1_ref, wkv2_ref, bkv2_ref,
                  wq1_ref, bq1_ref, wq2_ref, bq2_ref,
                  out_ref):
    tq = query_ref.shape[0]
    query = query_ref[...].astype(jnp.float32)                # (TQ, CK)
    inpv = inpv_ref[...]                                       # (4, TQ, V_IN) bf16

    # ---- fused imnet_k + imnet_v over all 4 taps: two fat MXU matmuls -----
    h = jnp.dot(inpv.reshape(4 * tq, V_IN), wkv1_ref[...],
                preferred_element_type=jnp.float32)
    h = jnp.maximum(h + bkv1_ref[...], 0.0)                    # (4*TQ, 2*HID)
    wgt = jnp.dot(h.astype(jnp.bfloat16), wkv2_ref[...],
                  preferred_element_type=jnp.float32) + bkv2_ref[...]
    wgt = wgt.reshape(4, tq, CK + DV)                          # [wgt_k | wgt_v]

    inv_scale = jnp.float32(1.0 / SOFTMAX_SCALE)

    def tap(j):
        val = inpv[j, :, :DV].astype(jnp.float32)              # value  (TQ, DV)
        key = val[:, :CK]                                      # key    (TQ, CK)
        pred_k = key * wgt[j, :, :CK]
        logit = jnp.sum(query * pred_k, axis=-1, keepdims=True) * inv_scale
        pred_v = val * wgt[j, :, CK:]
        return logit, pred_v

    # ---- online softmax over the 4 taps (single live accumulator) ---------
    m, acc = tap(0)
    l = jnp.ones_like(m)                                       # exp(l0 - m) = 1
    for j in range(1, 4):
        logit, pred_v = tap(j)
        m_new = jnp.maximum(m, logit)
        a = jnp.exp(m - m_new)
        p = jnp.exp(logit - m_new)
        l = a * l + p
        acc = a * acc + p * pred_v
        m = m_new
    x = acc * pl.reciprocal(l, approx=True)                    # (TQ, DV)

    # ---- imnet_q -----------------------------------------------------------
    hq = jnp.maximum(
        jnp.dot(x.astype(jnp.bfloat16), wq1_ref[...],
                preferred_element_type=jnp.float32) + bq1_ref[...], 0.0)
    # TODO(synk): output block is (TQ, 3) -> masked stores; output bytes are
    # <3% of the stream here so we keep row-major instead of an in-kernel
    # transpose to a lane-dense (3, TQ) layout.
    out_ref[...] = (jnp.dot(hq.astype(jnp.bfloat16), wq2_ref[...],
                            preferred_element_type=jnp.float32) + bq2_ref[...])


def _round_up(x, m):
    return ((x + m - 1) // m) * m


def run_mcassr_kernel(query, inp_v, fw):
    """query: (N, CK) bf16; inp_v: (4, N, V_IN) bf16.  Returns (N, OUT_CH) f32."""
    n = query.shape[0]
    tq = int(min(TQ_MAX, max(128, _round_up(n, 128))))
    n_pad = _round_up(n, tq)
    if n_pad != n:
        query = jnp.pad(query, ((0, n_pad - n), (0, 0)))
        inp_v = jnp.pad(inp_v, ((0, 0), (0, n_pad - n), (0, 0)))

    def full(a):
        return pl.BlockSpec(a.shape, lambda i: (0,) * a.ndim)

    out = pl.pallas_call(
        mcassr_kernel,
        out_shape=jax.ShapeDtypeStruct((n_pad, OUT_CH), jnp.float32),
        grid_spec=pltpu.PrefetchScalarGridSpec(
            num_scalar_prefetch=0,
            grid=(n_pad // tq,),
            in_specs=[
                pl.BlockSpec((tq, CK), lambda i: (i, 0)),
                pl.BlockSpec((4, tq, V_IN), lambda i: (0, i, 0)),
                full(fw['wkv1']), full(fw['bkv1']),
                full(fw['wkv2']), full(fw['bkv2']),
                full(fw['wq1']), full(fw['bq1']),
                full(fw['wq2']), full(fw['bq2']),
            ],
            out_specs=pl.BlockSpec((tq, OUT_CH), lambda i: (i, 0)),
        ),
        compiler_params=pltpu.CompilerParams(
            dimension_semantics=("parallel",),        # tiles independent -> 2 TCs on v7x
            vmem_limit_bytes=32 * 1024 * 1024),       # raise v5e's 16 MiB default
    )(query, inp_v,
      fw['wkv1'], fw['bkv1'], fw['wkv2'], fw['bkv2'],
      fw['wq1'], fw['bq1'], fw['wq2'], fw['bq2'])
    return out[:n]


# ---------------------------------------------------------------------------
# Weight fusion (imnet_k embedded into the inp_v column layout + imnet_v)
# ---------------------------------------------------------------------------
def fuse_params(p):
    # inp_v columns = [key(CK) | nl(NL_DIM) | rel(2) | scale(2)]
    # inp_k columns = [key(CK) | rel(2) | scale(2)]
    wk1_full = jnp.zeros((V_IN, HID), jnp.float32)
    wk1_full = wk1_full.at[:CK].set(p['wk1'][:CK])
    wk1_full = wk1_full.at[DV:].set(p['wk1'][CK:])
    wkv1 = jnp.concatenate([wk1_full, p['wv1']], axis=1)         # (V_IN, 2*HID)
    bkv1 = jnp.concatenate([p['bk1'], p['bv1']], axis=1)         # (1, 2*HID)
    wkv2 = jnp.zeros((2 * HID, CK + DV), jnp.float32)            # block-diagonal
    wkv2 = wkv2.at[:HID, :CK].set(p['wk2'])
    wkv2 = wkv2.at[HID:, CK:].set(p['wv2'])
    bkv2 = jnp.concatenate([p['bk2'], p['bv2']], axis=1)         # (1, CK+DV)
    return dict(
        wkv1=wkv1.astype(jnp.bfloat16), bkv1=bkv1,
        wkv2=wkv2.astype(jnp.bfloat16), bkv2=bkv2,
        wq1=p['wq1'].astype(jnp.bfloat16), bq1=p['bq1'],
        wq2=p['wq2'].astype(jnp.bfloat16), bq2=p['bq2'])


# ---------------------------------------------------------------------------
# Plain-JAX glue (convs, unfold, grid_sample gathers, coordinate math)
# ---------------------------------------------------------------------------
def conv3x3(x, w, b):
    out = lax.conv_general_dilated(
        x, w, window_strides=(1, 1), padding=((1, 1), (1, 1)),
        dimension_numbers=('NCHW', 'OIHW', 'NCHW'))
    return out + b[None, :, None, None]


def unfold3x3(feat):
    """F.unfold(feat, 3, padding=1).view(B, C*9, H, W) with torch ordering."""
    B, C, H, W = feat.shape
    fp = jnp.pad(feat, ((0, 0), (0, 0), (1, 1), (1, 1)))
    patches = [fp[:, :, ki:ki + H, kj:kj + W] for ki in range(3) for kj in range(3)]
    out = jnp.stack(patches, axis=2)          # (B, C, 9, H, W)
    return out.reshape(B, C * 9, H, W)


def make_coord(shape):
    """Pixel-center coords in [-1, 1]; returns (H, W, 2) with (h, w) order."""
    axes = [(-1.0 + (2.0 * jnp.arange(n, dtype=jnp.float32) + 1.0) / n) for n in shape]
    g0, g1 = jnp.meshgrid(axes[0], axes[1], indexing='ij')
    return jnp.stack([g0, g1], axis=-1)


def grid_sample_nearest(feat, coord_hw):
    """feat (B,C,H,W), coord_hw (B,q,2) with normalized (h, w). align_corners=False."""
    B, C, H, W = feat.shape
    y = ((coord_hw[..., 0] + 1.0) * H - 1.0) * 0.5
    x = ((coord_hw[..., 1] + 1.0) * W - 1.0) * 0.5
    iy = jnp.clip(jnp.round(y), 0, H - 1).astype(jnp.int32)
    ix = jnp.clip(jnp.round(x), 0, W - 1).astype(jnp.int32)

    def gather_b(f, iy_b, ix_b):
        return f[:, iy_b, ix_b].T              # (q, C)

    return jax.vmap(gather_b)(feat, iy, ix)


def grid_sample_bilinear_border(feat, coord_hw):
    B, C, H, W = feat.shape
    y = ((coord_hw[..., 0] + 1.0) * H - 1.0) * 0.5
    x = ((coord_hw[..., 1] + 1.0) * W - 1.0) * 0.5
    y0 = jnp.floor(y)
    x0 = jnp.floor(x)
    wy = (y - y0)[..., None]
    wx = (x - x0)[..., None]
    y0i = jnp.clip(y0, 0, H - 1).astype(jnp.int32)
    y1i = jnp.clip(y0 + 1, 0, H - 1).astype(jnp.int32)
    x0i = jnp.clip(x0, 0, W - 1).astype(jnp.int32)
    x1i = jnp.clip(x0 + 1, 0, W - 1).astype(jnp.int32)

    def gb(f, yi, xi):
        return f[:, yi, xi].T

    v00 = jax.vmap(gb)(feat, y0i, x0i)
    v01 = jax.vmap(gb)(feat, y0i, x1i)
    v10 = jax.vmap(gb)(feat, y1i, x0i)
    v11 = jax.vmap(gb)(feat, y1i, x1i)
    return (v00 * (1 - wy) * (1 - wx) + v01 * (1 - wy) * wx
            + v10 * wy * (1 - wx) + v11 * wy * wx)


def init_params(key):
    ks = jax.random.split(key, 16)

    def dense(kw, kb, i, o):
        w = jax.random.normal(kw, (i, o), jnp.float32) * (1.0 / jnp.sqrt(i))
        b = jax.random.normal(kb, (1, o), jnp.float32) * 0.01
        return w, b

    p = {}
    p['enc_w'] = jax.random.normal(ks[0], (ENC_DIM, IN_CH, 3, 3), jnp.float32) * 0.1
    p['enc_b'] = jnp.zeros((ENC_DIM,), jnp.float32)
    # TODO(synk): CrossScaleAttention is not defined in the reference source;
    # it is replaced by a deterministic 3x3 conv producing the same channel count.
    p['cs_w'] = jax.random.normal(ks[1], (NL_DIM, ENC_DIM, 3, 3), jnp.float32) * 0.1
    p['cs_b'] = jnp.zeros((NL_DIM,), jnp.float32)
    p['wk1'], p['bk1'] = dense(ks[2], ks[3], K_IN, HID)
    p['wk2'], p['bk2'] = dense(ks[4], ks[5], HID, CK)
    p['wv1'], p['bv1'] = dense(ks[6], ks[7], V_IN, HID)
    p['wv2'], p['bv2'] = dense(ks[8], ks[9], HID, DV)
    p['wq1'], p['bq1'] = dense(ks[10], ks[11], Q_IN, HID)
    p['wq2'], p['bq2'] = dense(ks[12], ks[13], HID, OUT_CH)
    return p


@jax.jit
def mcassr_forward(params, x, coord, cell):
    """x: (B,3,H,W) NCHW; coord/cell: (B,q,2). Returns (B,q,3)."""
    B = x.shape[0]
    q = coord.shape[1]

    # ---- gen_feat ----
    feat = conv3x3(x, params['enc_w'], params['enc_b'])          # encoder
    nl_feat = conv3x3(feat, params['cs_w'], params['cs_b'])      # cs_attn proxy
    _, C, H, W = feat.shape

    feat_unf = unfold3x3(feat)                                   # (B, CK, H, W)
    feat_v = jnp.concatenate([feat_unf, nl_feat], axis=1)        # (B, DV, H, W)
    # feat_q == feat_k == feat_unf == feat_v[:, :CK]  -> dedup, single gather

    fc = make_coord((H, W))
    feat_coord = jnp.broadcast_to(jnp.transpose(fc, (2, 0, 1))[None], (B, 2, H, W))

    hw = jnp.array([H, W], jnp.float32)
    eps = 1e-6

    # ---- local ensemble (query branch) -- reduced to a single (N, CK) array
    rx = 1.0 / H
    ry = 1.0 / W
    q_feats, areas = [], []
    for vx in (-1, 1):
        for vy in (-1, 1):
            c_ = coord.at[..., 0].add(vx * rx + eps)
            c_ = c_.at[..., 1].add(vy * ry + eps)
            c_ = jnp.clip(c_, -1 + 1e-6, 1 - 1e-6)
            qf = grid_sample_nearest(feat_v[:, :CK], c_)         # (B, q, CK)
            qc = grid_sample_nearest(feat_coord, c_)             # (B, q, 2)
            rel = (coord - qc) * hw
            q_feats.append(qf)
            areas.append(jnp.abs(rel[..., 0] * rel[..., 1]) + 1e-9)
    tot = areas[0] + areas[1] + areas[2] + areas[3]
    # torch code swaps areas 0<->3 and 1<->2 before the weighted sum
    query = (q_feats[0] * (areas[3] / tot)[..., None]
             + q_feats[1] * (areas[2] / tot)[..., None]
             + q_feats[2] * (areas[1] / tot)[..., None]
             + q_feats[3] * (areas[0] / tot)[..., None])         # (B, q, CK)

    # ---- key / value taps: only inp_v = [value | rel | scale] is needed ----
    # (key == value[:, :CK]; imnet_k reads it out of inp_v via zero-padded W.)
    denom_h = jnp.maximum(1.0 - cell[:, 0, 0], 1e-6)             # guard div-by-0
    denom_w = jnp.maximum(1.0 - cell[:, 0, 1], 1e-6)
    rxk = (denom_h / (H - 1))[:, None]                           # == 1/tx
    ryk = (denom_w / (W - 1))[:, None]                           # == 1/ty
    scale_ = cell * hw                                           # (B, q, 2)

    inpv_list = []
    for vx in (-1, 1):
        for vy in (-1, 1):
            c_ = coord.at[..., 0].add(vx * rxk + eps)
            c_ = c_.at[..., 1].add(vy * ryk + eps)
            c_ = jnp.clip(c_, -1 + 1e-6, 1 - 1e-6)
            val = grid_sample_nearest(feat_v, c_)                # (B, q, DV)
            ck = grid_sample_nearest(feat_coord, c_)             # (B, q, 2)
            rel = (coord - ck) * hw
            inpv_list.append(jnp.concatenate([val, rel, scale_], axis=-1))

    inp_v = jnp.stack(inpv_list, axis=0).reshape(4, B * q, V_IN)  # (4, N, V_IN)

    # ---- Pallas hot path (bf16 streamed activations, f32 accumulation) ----
    fw = fuse_params(params)
    out = run_mcassr_kernel(query.reshape(B * q, CK).astype(jnp.bfloat16),
                            inp_v.astype(jnp.bfloat16), fw)
    out = out.reshape(B, q, OUT_CH)

    # ---- bilinear residual from the low-res input --------------------------
    out = out + grid_sample_bilinear_border(x, coord)
    return out


# ---------------------------------------------------------------------------
# Demo
# ---------------------------------------------------------------------------
if __name__ == "__main__":
    key = jax.random.PRNGKey(0)
    k_param, k_x = jax.random.split(key)

    params = init_params(k_param)

    B, H, W = 2, 16, 16
    x = jax.random.normal(k_x, (B, IN_CH, H, W), jnp.float32)

    # query coordinates for an 8x8 target grid, and matching cells
    tgt = 8
    coord = make_coord((tgt, tgt)).reshape(-1, 2)                # (64, 2)
    coord = jnp.broadcast_to(coord[None], (B, tgt * tgt, 2)).astype(jnp.float32)
    cell = jnp.full((B, tgt * tgt, 2), 2.0 / tgt, jnp.float32)

    pred = mcassr_forward(params, x, coord, cell)
    jax.block_until_ready(pred)
    assert pred.shape == (B, tgt * tgt, OUT_CH)
    assert bool(jnp.all(jnp.isfinite(pred)))
    print("KERNEL_OK")
</pallas_src>

<mosaic_0001>
module attributes {stable_mosaic.version = 11 : i64} {
  func.func @mcassr_kernel(%arg0: i32, %arg1: memref<128x36xbf16, #tpu.memory_space<vmem>>, %arg2: memref<4x128x44xbf16, #tpu.memory_space<vmem>>, %arg3: memref<44x64xbf16, #tpu.memory_space<vmem>>, %arg4: memref<1x64xf32, #tpu.memory_space<vmem>>, %arg5: memref<64x76xbf16, #tpu.memory_space<vmem>>, %arg6: memref<1x76xf32, #tpu.memory_space<vmem>>, %arg7: memref<40x32xbf16, #tpu.memory_space<vmem>>, %arg8: memref<1x32xf32, #tpu.memory_space<vmem>>, %arg9: memref<32x3xbf16, #tpu.memory_space<vmem>>, %arg10: memref<1x3xf32, #tpu.memory_space<vmem>>, %arg11: memref<128x3xf32, #tpu.memory_space<vmem>>) attributes {dimension_semantics = [#tpu.dimension_semantics<parallel>], iteration_bounds = array<i64: 1>, scalar_prefetch = 0 : i64, scratch_operands = 0 : i64, tpu.core_type = #tpu.core_type<tc>, window_params = [{transform_indices = @transform_0, window_bounds = array<i64: 128, 36>}, {transform_indices = @transform_1, window_bounds = array<i64: 4, 128, 44>}, {pipeline_mode = #tpu.pipeline_mode<synchronous>, transform_indices = @transform_2, window_bounds = array<i64: 44, 64>}, {pipeline_mode = #tpu.pipeline_mode<synchronous>, transform_indices = @transform_3, window_bounds = array<i64: 1, 64>}, {pipeline_mode = #tpu.pipeline_mode<synchronous>, transform_indices = @transform_4, window_bounds = array<i64: 64, 76>}, {pipeline_mode = #tpu.pipeline_mode<synchronous>, transform_indices = @transform_5, window_bounds = array<i64: 1, 76>}, {pipeline_mode = #tpu.pipeline_mode<synchronous>, transform_indices = @transform_6, window_bounds = array<i64: 40, 32>}, {pipeline_mode = #tpu.pipeline_mode<synchronous>, transform_indices = @transform_7, window_bounds = array<i64: 1, 32>}, {pipeline_mode = #tpu.pipeline_mode<synchronous>, transform_indices = @transform_8, window_bounds = array<i64: 32, 3>}, {pipeline_mode = #tpu.pipeline_mode<synchronous>, transform_indices = @transform_9, window_bounds = array<i64: 1, 3>}, {transform_indices = @transform_10, window_bounds = array<i64: 128, 3>}]} {
    %c0 = arith.constant 0 : index
    %c0_0 = arith.constant 0 : index
    %0 = vector.load %arg1[%c0, %c0_0] : memref<128x36xbf16, #tpu.memory_space<vmem>>, vector<128x36xbf16>
    %1 = arith.extf %0 : vector<128x36xbf16> to vector<128x36xf32>
    %c0_1 = arith.constant 0 : index
    %c0_2 = arith.constant 0 : index
    %c0_3 = arith.constant 0 : index
    %2 = vector.load %arg2[%c0_1, %c0_2, %c0_3] : memref<4x128x44xbf16, #tpu.memory_space<vmem>>, vector<4x128x44xbf16>
    %3 = vector.shape_cast %2 : vector<4x128x44xbf16> to vector<512x44xbf16>
    %c0_4 = arith.constant 0 : index
    %c0_5 = arith.constant 0 : index
    %4 = vector.load %arg3[%c0_4, %c0_5] : memref<44x64xbf16, #tpu.memory_space<vmem>>, vector<44x64xbf16>
    %cst = arith.constant dense<0.000000e+00> : vector<512x64xf32>
    %5 = tpu.matmul %3, %4, %cst {dimension_numbers = #tpu.dot_dimension_numbers<[1], [0], [0], [1], [0, 0, 1, 1], [], []>} : vector<512x44xbf16>, vector<44x64xbf16>, vector<512x64xf32> -> vector<512x64xf32>
    %c0_6 = arith.constant 0 : index
    %c0_7 = arith.constant 0 : index
    %6 = vector.load %arg4[%c0_6, %c0_7] : memref<1x64xf32, #tpu.memory_space<vmem>>, vector<1x64xf32>
    %7 = vector.broadcast %6 : vector<1x64xf32> to vector<512x64xf32>
    %8 = arith.addf %5, %7 : vector<512x64xf32>
    %cst_8 = arith.constant 0.000000e+00 : f32
    %9 = vector.broadcast %cst_8 : f32 to vector<512x64xf32>
    %10 = arith.maximumf %8, %9 : vector<512x64xf32>
    %11 = arith.truncf %10 : vector<512x64xf32> to vector<512x64xbf16>
    %c0_9 = arith.constant 0 : index
    %c0_10 = arith.constant 0 : index
    %12 = vector.load %arg5[%c0_9, %c0_10] : memref<64x76xbf16, #tpu.memory_space<vmem>>, vector<64x76xbf16>
    %cst_11 = arith.constant dense<0.000000e+00> : vector<512x76xf32>
    %13 = tpu.matmul %11, %12, %cst_11 {dimension_numbers = #tpu.dot_dimension_numbers<[1], [0], [0], [1], [0, 0, 1, 1], [], []>} : vector<512x64xbf16>, vector<64x76xbf16>, vector<512x76xf32> -> vector<512x76xf32>
    %c0_12 = arith.constant 0 : index
    %c0_13 = arith.constant 0 : index
    %14 = vector.load %arg6[%c0_12, %c0_13] : memref<1x76xf32, #tpu.memory_space<vmem>>, vector<1x76xf32>
    %15 = vector.broadcast %14 : vector<1x76xf32> to vector<512x76xf32>
    %16 = arith.addf %13, %15 : vector<512x76xf32>
    %17 = vector.shape_cast %16 : vector<512x76xf32> to vector<4x128x76xf32>
    %18 = vector.extract_strided_slice %2 {offsets = [0, 0, 0], sizes = [1, 128, 40], strides = [1, 1, 1]} : vector<4x128x44xbf16> to vector<1x128x40xbf16>
    %19 = vector.shape_cast %18 : vector<1x128x40xbf16> to vector<128x40xbf16>
    %20 = arith.extf %19 : vector<128x40xbf16> to vector<128x40xf32>
    %21 = vector.extract_strided_slice %20 {offsets = [0, 0], sizes = [128, 36], strides = [1, 1]} : vector<128x40xf32> to vector<128x36xf32>
    %22 = vector.extract_strided_slice %17 {offsets = [0, 0, 0], sizes = [1, 128, 36], strides = [1, 1, 1]} : vector<4x128x76xf32> to vector<1x128x36xf32>
    %23 = vector.shape_cast %22 : vector<1x128x36xf32> to vector<128x36xf32>
    %24 = arith.mulf %21, %23 : vector<128x36xf32>
    %25 = arith.mulf %1, %24 : vector<128x36xf32>
    %cst_14 = arith.constant dense<0.000000e+00> : vector<128xf32>
    %26 = vector.multi_reduction <add>, %25, %cst_14 [1] : vector<128x36xf32> to vector<128xf32>
    %27 = vector.shape_cast %26 : vector<128xf32> to vector<128x1xf32>
    %cst_15 = arith.constant 1.000000e+00 : f32
    %28 = vector.broadcast %cst_15 : f32 to vector<128x1xf32>
    %29 = arith.mulf %27, %28 : vector<128x1xf32>
    %30 = vector.extract_strided_slice %17 {offsets = [0, 0, 36], sizes = [1, 128, 40], strides = [1, 1, 1]} : vector<4x128x76xf32> to vector<1x128x40xf32>
    %31 = vector.shape_cast %30 : vector<1x128x40xf32> to vector<128x40xf32>
    %32 = arith.mulf %20, %31 : vector<128x40xf32>
    %cst_16 = arith.constant 1.000000e+00 : f32
    %33 = vector.broadcast %cst_16 : f32 to vector<128x1xf32>
    %34 = vector.extract_strided_slice %2 {offsets = [1, 0, 0], sizes = [1, 128, 40], strides = [1, 1, 1]} : vector<4x128x44xbf16> to vector<1x128x40xbf16>
    %35 = vector.shape_cast %34 : vector<1x128x40xbf16> to vector<128x40xbf16>
    %36 = arith.extf %35 : vector<128x40xbf16> to vector<128x40xf32>
    %37 = vector.extract_strided_slice %36 {offsets = [0, 0], sizes = [128, 36], strides = [1, 1]} : vector<128x40xf32> to vector<128x36xf32>
    %38 = vector.extract_strided_slice %17 {offsets = [1, 0, 0], sizes = [1, 128, 36], strides = [1, 1, 1]} : vector<4x128x76xf32> to vector<1x128x36xf32>
    %39 = vector.shape_cast %38 : vector<1x128x36xf32> to vector<128x36xf32>
    %40 = arith.mulf %37, %39 : vector<128x36xf32>
    %41 = arith.mulf %1, %40 : vector<128x36xf32>
    %cst_17 = arith.constant dense<0.000000e+00> : vector<128xf32>
    %42 = vector.multi_reduction <add>, %41, %cst_17 [1] : vector<128x36xf32> to vector<128xf32>
    %43 = vector.shape_cast %42 : vector<128xf32> to vector<128x1xf32>
    %cst_18 = arith.constant 1.000000e+00 : f32
    %44 = vector.broadcast %cst_18 : f32 to vector<128x1xf32>
    %45 = arith.mulf %43, %44 : vector<128x1xf32>
    %46 = vector.extract_strided_slice %17 {offsets = [1, 0, 36], sizes = [1, 128, 40], strides = [1, 1, 1]} : vector<4x128x76xf32> to vector<1x128x40xf32>
    %47 = vector.shape_cast %46 : vector<1x128x40xf32> to vector<128x40xf32>
    %48 = arith.mulf %36, %47 : vector<128x40xf32>
    %49 = arith.maximumf %29, %45 : vector<128x1xf32>
    %50 = arith.subf %29, %49 : vector<128x1xf32>
    %51 = math.exp %50 : vector<128x1xf32>
    %52 = arith.subf %45, %49 : vector<128x1xf32>
    %53 = math.exp %52 : vector<128x1xf32>
    %54 = arith.mulf %51, %33 : vector<128x1xf32>
    %55 = arith.addf %54, %53 : vector<128x1xf32>
    %56 = vector.broadcast %51 : vector<128x1xf32> to vector<128x40xf32>
    %57 = arith.mulf %56, %32 : vector<128x40xf32>
    %58 = vector.broadcast %53 : vector<128x1xf32> to vector<128x40xf32>
    %59 = arith.mulf %58, %48 : vector<128x40xf32>
    %60 = arith.addf %57, %59 : vector<128x40xf32>
    %61 = vector.extract_strided_slice %2 {offsets = [2, 0, 0], sizes = [1, 128, 40], strides = [1, 1, 1]} : vector<4x128x44xbf16> to vector<1x128x40xbf16>
    %62 = vector.shape_cast %61 : vector<1x128x40xbf16> to vector<128x40xbf16>
    %63 = arith.extf %62 : vector<128x40xbf16> to vector<128x40xf32>
    %64 = vector.extract_strided_slice %63 {offsets = [0, 0], sizes = [128, 36], strides = [1, 1]} : vector<128x40xf32> to vector<128x36xf32>
    %65 = vector.extract_strided_slice %17 {offsets = [2, 0, 0], sizes = [1, 128, 36], strides = [1, 1, 1]} : vector<4x128x76xf32> to vector<1x128x36xf32>
    %66 = vector.shape_cast %65 : vector<1x128x36xf32> to vector<128x36xf32>
    %67 = arith.mulf %64, %66 : vector<128x36xf32>
    %68 = arith.mulf %1, %67 : vector<128x36xf32>
    %cst_19 = arith.constant dense<0.000000e+00> : vector<128xf32>
    %69 = vector.multi_reduction <add>, %68, %cst_19 [1] : vector<128x36xf32> to vector<128xf32>
    %70 = vector.shape_cast %69 : vector<128xf32> to vector<128x1xf32>
    %cst_20 = arith.constant 1.000000e+00 : f32
    %71 = vector.broadcast %cst_20 : f32 to vector<128x1xf32>
    %72 = arith.mulf %70, %71 : vector<128x1xf32>
    %73 = vector.extract_strided_slice %17 {offsets = [2, 0, 36], sizes = [1, 128, 40], strides = [1, 1, 1]} : vector<4x128x76xf32> to vector<1x128x40xf32>
    %74 = vector.shape_cast %73 : vector<1x128x40xf32> to vector<128x40xf32>
    %75 = arith.mulf %63, %74 : vector<128x40xf32>
    %76 = arith.maximumf %49, %72 : vector<128x1xf32>
    %77 = arith.subf %49, %76 : vector<128x1xf32>
    %78 = math.exp %77 : vector<128x1xf32>
    %79 = arith.subf %72, %76 : vector<128x1xf32>
    %80 = math.exp %79 : vector<128x1xf32>
    %81 = arith.mulf %78, %55 : vector<128x1xf32>
    %82 = arith.addf %81, %80 : vector<128x1xf32>
    %83 = vector.broadcast %78 : vector<128x1xf32> to vector<128x40xf32>
    %84 = arith.mulf %83, %60 : vector<128x40xf32>
    %85 = vector.broadcast %80 : vector<128x1xf32> to vector<128x40xf32>
    %86 = arith.mulf %85, %75 : vector<128x40xf32>
    %87 = arith.addf %84, %86 : vector<128x40xf32>
    %88 = vector.extract_strided_slice %2 {offsets = [3, 0, 0], sizes = [1, 128, 40], strides = [1, 1, 1]} : vector<4x128x44xbf16> to vector<1x128x40xbf16>
    %89 = vector.shape_cast %88 : vector<1x128x40xbf16> to vector<128x40xbf16>
    %90 = arith.extf %89 : vector<128x40xbf16> to vector<128x40xf32>
    %91 = vector.extract_strided_slice %90 {offsets = [0, 0], sizes = [128, 36], strides = [1, 1]} : vector<128x40xf32> to vector<128x36xf32>
    %92 = vector.extract_strided_slice %17 {offsets = [3, 0, 0], sizes = [1, 128, 36], strides = [1, 1, 1]} : vector<4x128x76xf32> to vector<1x128x36xf32>
    %93 = vector.shape_cast %92 : vector<1x128x36xf32> to vector<128x36xf32>
    %94 = arith.mulf %91, %93 : vector<128x36xf32>
    %95 = arith.mulf %1, %94 : vector<128x36xf32>
    %cst_21 = arith.constant dense<0.000000e+00> : vector<128xf32>
    %96 = vector.multi_reduction <add>, %95, %cst_21 [1] : vector<128x36xf32> to vector<128xf32>
    %97 = vector.shape_cast %96 : vector<128xf32> to vector<128x1xf32>
    %cst_22 = arith.constant 1.000000e+00 : f32
    %98 = vector.broadcast %cst_22 : f32 to vector<128x1xf32>
    %99 = arith.mulf %97, %98 : vector<128x1xf32>
    %100 = vector.extract_strided_slice %17 {offsets = [3, 0, 36], sizes = [1, 128, 40], strides = [1, 1, 1]} : vector<4x128x76xf32> to vector<1x128x40xf32>
    %101 = vector.shape_cast %100 : vector<1x128x40xf32> to vector<128x40xf32>
    %102 = arith.mulf %90, %101 : vector<128x40xf32>
    %103 = arith.maximumf %76, %99 : vector<128x1xf32>
    %104 = arith.subf %76, %103 : vector<128x1xf32>
    %105 = math.exp %104 : vector<128x1xf32>
    %106 = arith.subf %99, %103 : vector<128x1xf32>
    %107 = math.exp %106 : vector<128x1xf32>
    %108 = arith.mulf %105, %82 : vector<128x1xf32>
    %109 = arith.addf %108, %107 : vector<128x1xf32>
    %110 = vector.broadcast %105 : vector<128x1xf32> to vector<128x40xf32>
    %111 = arith.mulf %110, %87 : vector<128x40xf32>
    %112 = vector.broadcast %107 : vector<128x1xf32> to vector<128x40xf32>
    %113 = arith.mulf %112, %102 : vector<128x40xf32>
    %114 = arith.addf %111, %113 : vector<128x40xf32>
    %115 = tpu.reciprocal %109 {approx = true} : vector<128x1xf32> -> vector<128x1xf32>
    %116 = vector.broadcast %115 : vector<128x1xf32> to vector<128x40xf32>
    %117 = arith.mulf %114, %116 : vector<128x40xf32>
    %118 = arith.truncf %117 : vector<128x40xf32> to vector<128x40xbf16>
    %c0_23 = arith.constant 0 : index
    %c0_24 = arith.constant 0 : index
    %119 = vector.load %arg7[%c0_23, %c0_24] : memref<40x32xbf16, #tpu.memory_space<vmem>>, vector<40x32xbf16>
    %cst_25 = arith.constant dense<0.000000e+00> : vector<128x32xf32>
    %120 = tpu.matmul %118, %119, %cst_25 {dimension_numbers = #tpu.dot_dimension_numbers<[1], [0], [0], [1], [0, 0, 1, 1], [], []>} : vector<128x40xbf16>, vector<40x32xbf16>, vector<128x32xf32> -> vector<128x32xf32>
    %c0_26 = arith.constant 0 : index
    %c0_27 = arith.constant 0 : index
    %121 = vector.load %arg8[%c0_26, %c0_27] : memref<1x32xf32, #tpu.memory_space<vmem>>, vector<1x32xf32>
    %122 = vector.broadcast %121 : vector<1x32xf32> to vector<128x32xf32>
    %123 = arith.addf %120, %122 : vector<128x32xf32>
    %cst_28 = arith.constant 0.000000e+00 : f32
    %124 = vector.broadcast %cst_28 : f32 to vector<128x32xf32>
    %125 = arith.maximumf %123, %124 : vector<128x32xf32>
    %126 = arith.truncf %125 : vector<128x32xf32> to vector<128x32xbf16>
    %c0_29 = arith.constant 0 : index
    %c0_30 = arith.constant 0 : index
    %127 = vector.load %arg9[%c0_29, %c0_30] : memref<32x3xbf16, #tpu.memory_space<vmem>>, vector<32x3xbf16>
    %cst_31 = arith.constant dense<0.000000e+00> : vector<128x3xf32>
    %128 = tpu.matmul %126, %127, %cst_31 {dimension_numbers = #tpu.dot_dimension_numbers<[1], [0], [0], [1], [0, 0, 1, 1], [], []>} : vector<128x32xbf16>, vector<32x3xbf16>, vector<128x3xf32> -> vector<128x3xf32>
    %c0_32 = arith.constant 0 : index
    %c0_33 = arith.constant 0 : index
    %129 = vector.load %arg10[%c0_32, %c0_33] : memref<1x3xf32, #tpu.memory_space<vmem>>, vector<1x3xf32>
    %130 = vector.broadcast %129 : vector<1x3xf32> to vector<128x3xf32>
    %131 = arith.addf %128, %130 : vector<128x3xf32>
    %c0_34 = arith.constant 0 : index
    %c0_35 = arith.constant 0 : index
    %132 = vector.load %arg11[%c0_34, %c0_35] : memref<128x3xf32, #tpu.memory_space<vmem>>, vector<128x3xf32>
    tpu.vector_store %arg11[%c0_34, %c0_35], %131 {strides = array<i32>} : memref<128x3xf32, #tpu.memory_space<vmem>>, vector<128x3xf32>,
    return
  }
  func.func @transform_0(%arg0: i32) -> (i32, i32) {
    %c0_i32 = arith.constant 0 : i32
    %c0_i32_0 = arith.constant 0 : i32
    return %arg0, %c0_i32 : i32, i32
  }
  func.func @transform_1(%arg0: i32) -> (i32, i32, i32) {
    %c0_i32 = arith.constant 0 : i32
    %c0_i32_0 = arith.constant 0 : i32
    %c0_i32_1 = arith.constant 0 : i32
    return %c0_i32, %arg0, %c0_i32_0 : i32, i32, i32
  }
  func.func @transform_2(%arg0: i32) -> (i32, i32) {
    %c0_i32 = arith.constant 0 : i32
    %c0_i32_0 = arith.constant 0 : i32
    %c0_i32_1 = arith.constant 0 : i32
    return %c0_i32, %c0_i32_0 : i32, i32
  }
  func.func @transform_3(%arg0: i32) -> (i32, i32) {
    %c0_i32 = arith.constant 0 : i32
    %c0_i32_0 = arith.constant 0 : i32
    %c0_i32_1 = arith.constant 0 : i32
    return %c0_i32, %c0_i32_0 : i32, i32
  }
  func.func @transform_4(%arg0: i32) -> (i32, i32) {
    %c0_i32 = arith.constant 0 : i32
    %c0_i32_0 = arith.constant 0 : i32
    %c0_i32_1 = arith.constant 0 : i32
    return %c0_i32, %c0_i32_0 : i32, i32
  }
  func.func @transform_5(%arg0: i32) -> (i32, i32) {
    %c0_i32 = arith.constant 0 : i32
    %c0_i32_0 = arith.constant 0 : i32
    %c0_i32_1 = arith.constant 0 : i32
    return %c0_i32, %c0_i32_0 : i32, i32
  }
  func.func @transform_6(%arg0: i32) -> (i32, i32) {
    %c0_i32 = arith.constant 0 : i32
    %c0_i32_0 = arith.constant 0 : i32
    %c0_i32_1 = arith.constant 0 : i32
    return %c0_i32, %c0_i32_0 : i32, i32
  }
  func.func @transform_7(%arg0: i32) -> (i32, i32) {
    %c0_i32 = arith.constant 0 : i32
    %c0_i32_0 = arith.constant 0 : i32
    %c0_i32_1 = arith.constant 0 : i32
    return %c0_i32, %c0_i32_0 : i32, i32
  }
  func.func @transform_8(%arg0: i32) -> (i32, i32) {
    %c0_i32 = arith.constant 0 : i32
    %c0_i32_0 = arith.constant 0 : i32
    %c0_i32_1 = arith.constant 0 : i32
    return %c0_i32, %c0_i32_0 : i32, i32
  }
  func.func @transform_9(%arg0: i32) -> (i32, i32) {
    %c0_i32 = arith.constant 0 : i32
    %c0_i32_0 = arith.constant 0 : i32
    %c0_i32_1 = arith.constant 0 : i32
    return %c0_i32, %c0_i32_0 : i32, i32
  }
  func.func @transform_10(%arg0: i32) -> (i32, i32) {
    %c0_i32 = arith.constant 0 : i32
    %c0_i32_0 = arith.constant 0 : i32
    return %arg0, %c0_i32 : i32, i32
  }
}

</mosaic_0001>

<llo_original>
// kernel: mcassr_forward.1
$region0: #{mcassr_forward.1}
  #allocation0 [shape = 'u32[]', space=smem, size = 0x4, offset = 0x4, fixed_abs, tag = 'smem constant byte address 0x4 - core index']
  #allocation1 [shape = 'u32[72,128]{1,0:T(1,128)}', space=vmem, size = 0x9000, scoped, tag = 'internal scratch']
  %s0 = inlined_call_operand.vmem [shape: bf16[128,36], index: 0, kind: input, shape index: {}]
  %s1 = inlined_call_operand.vmem [shape: bf16[4,128,44], index: 1, kind: input, shape index: {}]
  %s2 = inlined_call_operand.vmem [shape: bf16[44,64], index: 2, kind: input, shape index: {}]
  %s3 = inlined_call_operand.vmem [shape: f32[1,64], index: 3, kind: input, shape index: {}]
  %s4 = inlined_call_operand.vmem [shape: bf16[64,76], index: 4, kind: input, shape index: {}]
  %s5 = inlined_call_operand.vmem [shape: f32[1,76], index: 5, kind: input, shape index: {}]
  %s6 = inlined_call_operand.vmem [shape: bf16[40,32], index: 6, kind: input, shape index: {}]
  %s7 = inlined_call_operand.vmem [shape: f32[1,32], index: 7, kind: input, shape index: {}]
  %s8 = inlined_call_operand.vmem [shape: bf16[32,3], index: 8, kind: input, shape index: {}]
  %s9 = inlined_call_operand.vmem [shape: f32[1,3], index: 9, kind: input, shape index: {}]
  %s10 = inlined_call_operand.vmem [shape: f32[128,3], index: 10, kind: output, shape index: {}]
  %s11 = sld [smem:[#allocation0]]
  $region50: #{mcassr_forward.1} parent=0
    _
  %s13 = ssub.s32 1, %s11
  %s14 = scalar_select 0, %s13, %s11
  // Predicated region
  $region2: #{mcassr_forward.1} parent=0 // pred_check
    _
  $region3: #{mcassr_forward.1} parent=0 // pred_check_branch
    %16 = sbr.rel (0) target = $region5
  $region4: #{mcassr_forward.1} parent=0 // pred_region
    _
  $region5: #{mcassr_forward.1} parent=0 // pred_fallthru
    _
  // Predicated region
  $region6: #{mcassr_forward.1} parent=0 // pred_check
    _
  $region7: #{mcassr_forward.1} parent=0 // pred_check_branch
    %18 = sbr.rel (0) target = $region9
  $region8: #{mcassr_forward.1} parent=0 // pred_region
    _
  $region9: #{mcassr_forward.1} parent=0 // pred_fallthru
    _
  // Predicated region
  $region10: #{mcassr_forward.1} parent=0 // pred_check
    _
  $region11: #{mcassr_forward.1} parent=0 // pred_check_branch
    %20 = sbr.rel (0) target = $region13
  $region12: #{mcassr_forward.1} parent=0 // pred_region
    _
  $region13: #{mcassr_forward.1} parent=0 // pred_fallthru
    _
  // Predicated region
  $region14: #{mcassr_forward.1} parent=0 // pred_check
    _
  $region15: #{mcassr_forward.1} parent=0 // pred_check_branch
    %22 = sbr.rel (0) target = $region17
  $region16: #{mcassr_forward.1} parent=0 // pred_region
    _
  $region17: #{mcassr_forward.1} parent=0 // pred_fallthru
    _
  // Predicated region
  $region18: #{mcassr_forward.1} parent=0 // pred_check
    _
  $region19: #{mcassr_forward.1} parent=0 // pred_check_branch
    %24 = sbr.rel (0) target = $region21
  $region20: #{mcassr_forward.1} parent=0 // pred_region
    _
  $region21: #{mcassr_forward.1} parent=0 // pred_fallthru
    _
  // Predicated region
  $region22: #{mcassr_forward.1} parent=0 // pred_check
    _
  $region23: #{mcassr_forward.1} parent=0 // pred_check_branch
    %26 = sbr.rel (0) target = $region25
  $region24: #{mcassr_forward.1} parent=0 // pred_region
    _
  $region25: #{mcassr_forward.1} parent=0 // pred_fallthru
    _
  // Predicated region
  $region26: #{mcassr_forward.1} parent=0 // pred_check
    _
  $region27: #{mcassr_forward.1} parent=0 // pred_check_branch
    %28 = sbr.rel (0) target = $region29
  $region28: #{mcassr_forward.1} parent=0 // pred_region
    _
  $region29: #{mcassr_forward.1} parent=0 // pred_fallthru
    _
  // Predicated region
  $region30: #{mcassr_forward.1} parent=0 // pred_check
    _
  $region31: #{mcassr_forward.1} parent=0 // pred_check_branch
    %30 = sbr.rel (0) target = $region33
  $region32: #{mcassr_forward.1} parent=0 // pred_region
    _
  $region33: #{mcassr_forward.1} parent=0 // pred_fallthru
    _
  // Predicated region
  $region34: #{mcassr_forward.1} parent=0 // pred_check
    _
  $region35: #{mcassr_forward.1} parent=0 // pred_check_branch
    %32 = sbr.rel (0) target = $region37
  $region36: #{mcassr_forward.1} parent=0 // pred_region
    _
  $region37: #{mcassr_forward.1} parent=0 // pred_fallthru
    _
  // Predicated region
  $region38: #{mcassr_forward.1} parent=0 // pred_check
    _
  $region39: #{mcassr_forward.1} parent=0 // pred_check_branch
    %34 = sbr.rel (0) target = $region41
  $region40: #{mcassr_forward.1} parent=0 // pred_region
    _
  $region41: #{mcassr_forward.1} parent=0 // pred_fallthru
    _
  %v36 = vld [vmem:[%s0] sm:$0xf]
  %v37 = vld [vmem:[%s0 + $0x4] sm:$0xf]
  %v38 = vld [vmem:[%s0 + $0x8] sm:$0xf]
  %v39 = vld [vmem:[%s0 + $0xc] sm:$0xf]
  %v40 = vld [vmem:[%s0 + $0x10] sm:$0xf]
  %v41 = vld [vmem:[%s0 + $0x14] sm:$0xf]
  %v42 = vld [vmem:[%s0 + $0x18] sm:$0xf]
  %v43 = vld [vmem:[%s0 + $0x1c] sm:$0xf]
  %v44 = vld [vmem:[%s0 + $0x20] sm:$0xf]
  %v45 = vld [vmem:[%s0 + $0x24] sm:$0xf]
  %v46 = vld [vmem:[%s0 + $0x28] sm:$0xf]
  %v47 = vld [vmem:[%s0 + $0x2c] sm:$0xf]
  %v48 = vld [vmem:[%s0 + $0x30] sm:$0xf]
  %v49 = vld [vmem:[%s0 + $0x34] sm:$0xf]
  %v50 = vld [vmem:[%s0 + $0x38] sm:$0xf]
  %v51 = vld [vmem:[%s0 + $0x3c] sm:$0xf]
  %v52 = vunpack.c.l.bf16 %v36
  %v53 = vunpack.c.l.bf16 %v37
  %v54 = vunpack.c.l.bf16 %v38
  %v55 = vunpack.c.l.bf16 %v39
  %v56 = vunpack.c.l.bf16 %v40
  %v57 = vunpack.c.l.bf16 %v41
  %v58 = vunpack.c.l.bf16 %v42
  %v59 = vunpack.c.l.bf16 %v43
  %v60 = vunpack.c.l.bf16 %v44
  %v61 = vunpack.c.l.bf16 %v45
  %v62 = vunpack.c.l.bf16 %v46
  %v63 = vunpack.c.l.bf16 %v47
  %v64 = vunpack.c.l.bf16 %v48
  %v65 = vunpack.c.l.bf16 %v49
  %v66 = vunpack.c.l.bf16 %v50
  %v67 = vunpack.c.l.bf16 %v51
  %v68 = vld [vmem:[%s1] sm:$0xf]
  %v69 = vld [vmem:[%s1 + $0x4] sm:$0xf]
  %v70 = vld [vmem:[%s1 + $0x8] sm:$0xf]
  %v71 = vld [vmem:[%s1 + $0xc] sm:$0xf]
  %v72 = vld [vmem:[%s1 + $0x10] sm:$0xf]
  %v73 = vld [vmem:[%s1 + $0x14] sm:$0xf]
  %v74 = vld [vmem:[%s1 + $0x18] sm:$0xf]
  %v75 = vld [vmem:[%s1 + $0x1c] sm:$0xf]
  %v76 = vld [vmem:[%s1 + $0x20] sm:$0xf]
  %v77 = vld [vmem:[%s1 + $0x24] sm:$0xf]
  %v78 = vld [vmem:[%s1 + $0x28] sm:$0xf]
  %v79 = vld [vmem:[%s1 + $0x2c] sm:$0xf]
  %v80 = vld [vmem:[%s1 + $0x30] sm:$0xf]
  %v81 = vld [vmem:[%s1 + $0x34] sm:$0xf]
  %v82 = vld [vmem:[%s1 + $0x38] sm:$0xf]
  %v83 = vld [vmem:[%s1 + $0x3c] sm:$0xf]
  %v84 = vld [vmem:[%s1 + $0x40] sm:$0xf]
  %v85 = vld [vmem:[%s1 + $0x44] sm:$0xf]
  %v86 = vld [vmem:[%s1 + $0x48] sm:$0xf]
  %v87 = vld [vmem:[%s1 + $0x4c] sm:$0xf]
  %v88 = vld [vmem:[%s1 + $0x50] sm:$0xf]
  %v89 = vld [vmem:[%s1 + $0x54] sm:$0xf]
  %v90 = vld [vmem:[%s1 + $0x58] sm:$0xf]
  %v91 = vld [vmem:[%s1 + $0x5c] sm:$0xf]
  %v92 = vld [vmem:[%s1 + $0x60] sm:$0xf]
  %v93 = vld [vmem:[%s1 + $0x64] sm:$0xf]
  %v94 = vld [vmem:[%s1 + $0x68] sm:$0xf]
  %v95 = vld [vmem:[%s1 + $0x6c] sm:$0xf]
  %v96 = vld [vmem:[%s1 + $0x70] sm:$0xf]
  %v97 = vld [vmem:[%s1 + $0x74] sm:$0xf]
  %v98 = vld [vmem:[%s1 + $0x78] sm:$0xf]
  %v99 = vld [vmem:[%s1 + $0x7c] sm:$0xf]
  %v100 = vld [vmem:[%s1 + $0x80] sm:$0xf]
  %v101 = vld [vmem:[%s1 + $0x84] sm:$0xf]
  %v102 = vld [vmem:[%s1 + $0x88] sm:$0xf]
  %v103 = vld [vmem:[%s1 + $0x8c] sm:$0xf]
  %v104 = vld [vmem:[%s1 + $0x90] sm:$0xf]
  %v105 = vld [vmem:[%s1 + $0x94] sm:$0xf]
  %v106 = vld [vmem:[%s1 + $0x98] sm:$0xf]
  %v107 = vld [vmem:[%s1 + $0x9c] sm:$0xf]
  %v108 = vld [vmem:[%s1 + $0xa0] sm:$0xf]
  %v109 = vld [vmem:[%s1 + $0xa4] sm:$0xf]
  %v110 = vld [vmem:[%s1 + $0xa8] sm:$0xf]
  %v111 = vld [vmem:[%s1 + $0xac] sm:$0xf]
  %v112 = vld [vmem:[%s1 + $0xb0] sm:$0xf]
  %v113 = vld [vmem:[%s1 + $0xb4] sm:$0xf]
  %v114 = vld [vmem:[%s1 + $0xb8] sm:$0xf]
  %v115 = vld [vmem:[%s1 + $0xbc] sm:$0xf]
  %v116 = vld [vmem:[%s1 + $0xc0] sm:$0xf]
  %v117 = vld [vmem:[%s1 + $0xc4] sm:$0xf]
  %v118 = vld [vmem:[%s1 + $0xc8] sm:$0xf]
  %v119 = vld [vmem:[%s1 + $0xcc] sm:$0xf]
  %v120 = vld [vmem:[%s1 + $0xd0] sm:$0xf]
  %v121 = vld [vmem:[%s1 + $0xd4] sm:$0xf]
  %v122 = vld [vmem:[%s1 + $0xd8] sm:$0xf]
  %v123 = vld [vmem:[%s1 + $0xdc] sm:$0xf]
  %v124 = vld [vmem:[%s1 + $0xe0] sm:$0xf]
  %v125 = vld [vmem:[%s1 + $0xe4] sm:$0xf]
  %v126 = vld [vmem:[%s1 + $0xe8] sm:$0xf]
  %v127 = vld [vmem:[%s1 + $0xec] sm:$0xf]
  %v128 = vld [vmem:[%s1 + $0xf0] sm:$0xf]
  %v129 = vld [vmem:[%s1 + $0xf4] sm:$0xf]
  %v130 = vld [vmem:[%s1 + $0xf8] sm:$0xf]
  %v131 = vld [vmem:[%s1 + $0xfc] sm:$0xf]
  %v132 = vld [vmem:[%s2] sm:$0xf]
  %v133 = vld [vmem:[%s2 + $0x4] sm:$0xf]
  %v134 = vld [vmem:[%s2 + $0x8] sm:$0xf]
  %v135 = vld [vmem:[%s2 + $0xc] sm:$0xf]
  %v136 = vld [vmem:[%s2 + $0x10] sm:$0xf]
  %v137 = vld [vmem:[%s2 + $0x14] sm:$0x3]
  %v138 = vld [vmem:[%s3] sm:$0x1]
  %v140 = vperm.slane %v138, 0
  %v206 = vunpack.c.l.b16 %v68
  %v207 = vunpack.c.l.b16 %v69
  %v208 = vunpack.c.l.b16 %v70
  %v209 = vunpack.c.l.b16 %v71
  %v210 = vunpack.c.l.b16 %v72
  %v211 = vunpack.c.l.b16 %v73
  %v212 = vunpack.c.l.b16 %v74
  %v213 = vunpack.c.l.b16 %v75
  %v214 = vunpack.c.l.b16 %v76
  %v215 = vunpack.c.l.b16 %v77
  %v216 = vunpack.c.l.b16 %v78
  %v217 = vunpack.c.l.b16 %v79
  %v218 = vunpack.c.l.b16 %v80
  %v219 = vunpack.c.l.b16 %v81
  %v220 = vunpack.c.l.b16 %v82
  %v221 = vunpack.c.l.b16 %v83
  %v222 = vunpack.c.l.b16 %v84
  %v223 = vunpack.c.l.b16 %v85
  %v224 = vunpack.c.l.b16 %v86
  %v225 = vunpack.c.l.b16 %v87
  %v226 = vunpack.c.l.b16 %v88
  %v227 = vunpack.c.l.b16 %v89
  %v228 = vunpack.c.l.b16 %v90
  %v229 = vunpack.c.l.b16 %v91
  %v230 = vunpack.c.l.b16 %v92
  %v231 = vunpack.c.l.b16 %v93
  %v232 = vunpack.c.l.b16 %v94
  %v233 = vunpack.c.l.b16 %v95
  %v234 = vunpack.c.l.b16 %v96
  %v235 = vunpack.c.l.b16 %v97
  %v236 = vunpack.c.l.b16 %v98
  %v237 = vunpack.c.l.b16 %v99
  %v238 = vunpack.c.l.b16 %v100
  %v239 = vunpack.c.l.b16 %v101
  %v240 = vunpack.c.l.b16 %v102
  %v241 = vunpack.c.l.b16 %v103
  %v242 = vunpack.c.l.b16 %v104
  %v243 = vunpack.c.l.b16 %v105
  %v244 = vunpack.c.l.b16 %v106
  %v245 = vunpack.c.l.b16 %v107
  %v246 = vunpack.c.l.b16 %v108
  %v247 = vunpack.c.l.b16 %v109
  %v248 = vunpack.c.l.b16 %v110
  %v249 = vunpack.c.l.b16 %v111
  %v250 = vunpack.c.l.b16 %v112
  %v251 = vunpack.c.l.b16 %v113
  %v252 = vunpack.c.l.b16 %v114
  %v253 = vunpack.c.l.b16 %v115
  %v254 = vunpack.c.l.b16 %v116
  %v255 = vunpack.c.l.b16 %v117
  %v256 = vunpack.c.l.b16 %v118
  %v257 = vunpack.c.l.b16 %v119
  %v258 = vunpack.c.l.b16 %v120
  %v259 = vunpack.c.l.b16 %v121
  %v260 = vunpack.c.l.b16 %v122
  %v261 = vunpack.c.l.b16 %v123
  %v262 = vunpack.c.l.b16 %v124
  %v263 = vunpack.c.l.b16 %v125
  %v264 = vunpack.c.l.b16 %v126
  %v265 = vunpack.c.l.b16 %v127
  %v266 = vunpack.c.l.b16 %v128
  %v267 = vunpack.c.l.b16 %v129
  %v268 = vunpack.c.l.b16 %v130
  %v269 = vunpack.c.l.b16 %v131
  %v270 = vpack.c.b16 %v207, %v206
  %v271 = vpack.c.b16 %v209, %v208
  %v272 = vpack.c.b16 %v211, %v210
  %v273 = vpack.c.b16 %v213, %v212
  %v274 = vpack.c.b16 %v215, %v214
  %v275 = vpack.c.b16 %v217, %v216
  %v276 = vpack.c.b16 %v219, %v218
  %v277 = vpack.c.b16 %v221, %v220
  %v278 = vpack.c.b16 %v223, %v222
  %v279 = vpack.c.b16 %v225, %v224
  %v280 = vpack.c.b16 %v227, %v226
  %v281 = vpack.c.b16 %v229, %v228
  %v282 = vpack.c.b16 %v231, %v230
  %v283 = vpack.c.b16 %v233, %v232
  %v284 = vpack.c.b16 %v235, %v234
  %v285 = vpack.c.b16 %v237, %v236
  %v286 = vpack.c.b16 %v239, %v238
  %v287 = vpack.c.b16 %v241, %v240
  %v288 = vpack.c.b16 %v243, %v242
  %v289 = vpack.c.b16 %v245, %v244
  %v290 = vpack.c.b16 %v247, %v246
  %v291 = vpack.c.b16 %v249, %v248
  %v292 = vpack.c.b16 %v251, %v250
  %v293 = vpack.c.b16 %v253, %v252
  %v294 = vpack.c.b16 %v255, %v254
  %v295 = vpack.c.b16 %v257, %v256
  %v296 = vpack.c.b16 %v259, %v258
  %v297 = vpack.c.b16 %v261, %v260
  %v298 = vpack.c.b16 %v263, %v262
  %v299 = vpack.c.b16 %v265, %v264
  %v300 = vpack.c.b16 %v267, %v266
  %v301 = vpack.c.b16 %v269, %v268
  %v308 = vunpack.c.l.b16 %v132
  %v309 = vunpack.c.l.b16 %v133
  %v310 = vunpack.c.l.b16 %v134
  %v311 = vunpack.c.l.b16 %v135
  %v312 = vunpack.c.l.b16 %v136
  %v313 = vunpack.c.l.b16 %v137
  %v314 = vpack.c.b16 %v309, %v308
  %v315 = vpack.c.b16 %v311, %v310
  %v316 = vpack.c.b16 %v313, %v312
  %vm319 = vcmask 359424
  %v321 = vsel %vm319, %v270, 0
  %v324 = vsel %vm319, %v271, 0
  %v327 = vsel %vm319, %v272, 0
  %v330 = vsel %vm319, %v273, 0
  %v333 = vsel %vm319, %v274, 0
  %v336 = vsel %vm319, %v275, 0
  %v339 = vsel %vm319, %v276, 0
  %v342 = vsel %vm319, %v277, 0
  %v345 = vsel %vm319, %v278, 0
  %v348 = vsel %vm319, %v279, 0
  %v351 = vsel %vm319, %v280, 0
  %v354 = vsel %vm319, %v281, 0
  %v357 = vsel %vm319, %v282, 0
  %v360 = vsel %vm319, %v283, 0
  %v363 = vsel %vm319, %v284, 0
  %v366 = vsel %vm319, %v285, 0
  %v369 = vsel %vm319, %v286, 0
  %v372 = vsel %vm319, %v287, 0
  %v375 = vsel %vm319, %v288, 0
  %v378 = vsel %vm319, %v289, 0
  %v381 = vsel %vm319, %v290, 0
  %v384 = vsel %vm319, %v291, 0
  %v387 = vsel %vm319, %v292, 0
  %v390 = vsel %vm319, %v293, 0
  %v393 = vsel %vm319, %v294, 0
  %v396 = vsel %vm319, %v295, 0
  %v399 = vsel %vm319, %v296, 0
  %v402 = vsel %vm319, %v297, 0
  %v405 = vsel %vm319, %v298, 0
  %v408 = vsel %vm319, %v299, 0
  %v411 = vsel %vm319, %v300, 0
  %v414 = vsel %vm319, %v301, 0
  %vm416 = vcmask 1045504
  %v418 = vsel %vm416, %v316, 0
  %420 = vmatpush.bf16.msra.mxu0 0
  %421 = vmatpush.bf16.msra.mxu0 0
  %422 = vmatpush.bf16.msra.mxu0 0
  %423 = vmatpush.bf16.msra.mxu0 0
  %424 = vmatpush.bf16.msra.mxu0 0
  %425 = vmatpush.bf16.msra.mxu0 %v418
  %426 = vmatpush.bf16.msra.mxu0 %v315
  %427 = vmatpush.bf16.msra.mxu0 %v314
  %428 = vmatmul.bf16.gmra.mxu0 %v321
  %v429 = vpop.f32.mrf.mxu0
  %v430 = vadd.f32 %v140, %v429
  %v431 = vpop.f32.mrf.mxu0
  %v432 = vadd.f32 %v140, %v431
  %433 = vmatmul.bf16.gmra.mxu0 %v324
  %v434 = vpop.f32.mrf.mxu0
  %v435 = vadd.f32 %v140, %v434
  %v436 = vpop.f32.mrf.mxu0
  %v437 = vadd.f32 %v140, %v436
  %438 = vmatmul.bf16.gmra.mxu0 %v327
  %v439 = vpop.f32.mrf.mxu0
  %v440 = vadd.f32 %v140, %v439
  %v441 = vpop.f32.mrf.mxu0
  %v442 = vadd.f32 %v140, %v441
  %443 = vmatmul.bf16.gmra.mxu0 %v330
  %v444 = vpop.f32.mrf.mxu0
  %v445 = vadd.f32 %v140, %v444
  %v446 = vpop.f32.mrf.mxu0
  %v447 = vadd.f32 %v140, %v446
  %448 = vmatmul.bf16.gmra.mxu0 %v333
  %v449 = vpop.f32.mrf.mxu0
  %v450 = vadd.f32 %v140, %v449
  %v451 = vpop.f32.mrf.mxu0
  %v452 = vadd.f32 %v140, %v451
  %453 = vmatmul.bf16.gmra.mxu0 %v336
  %v454 = vpop.f32.mrf.mxu0
  %v455 = vadd.f32 %v140, %v454
  %v456 = vpop.f32.mrf.mxu0
  %v457 = vadd.f32 %v140, %v456
  %458 = vmatmul.bf16.gmra.mxu0 %v339
  %v459 = vpop.f32.mrf.mxu0
  %v460 = vadd.f32 %v140, %v459
  %v461 = vpop.f32.mrf.mxu0
  %v462 = vadd.f32 %v140, %v461
  %463 = vmatmul.bf16.gmra.mxu0 %v342
  %v464 = vpop.f32.mrf.mxu0
  %v465 = vadd.f32 %v140, %v464
  %v466 = vpop.f32.mrf.mxu0
  %v467 = vadd.f32 %v140, %v466
  %468 = vmatmul.bf16.gmra.mxu0 %v345
  %v469 = vpop.f32.mrf.mxu0
  %v470 = vadd.f32 %v140, %v469
  %v471 = vpop.f32.mrf.mxu0
  %v472 = vadd.f32 %v140, %v471
  %473 = vmatmul.bf16.gmra.mxu0 %v348
  %v474 = vpop.f32.mrf.mxu0
  %v475 = vadd.f32 %v140, %v474
  %v476 = vpop.f32.mrf.mxu0
  %v477 = vadd.f32 %v140, %v476
  %478 = vmatmul.bf16.gmra.mxu0 %v351
  %v479 = vpop.f32.mrf.mxu0
  %v480 = vadd.f32 %v140, %v479
  %v481 = vpop.f32.mrf.mxu0
  %v482 = vadd.f32 %v140, %v481
  %483 = vmatmul.bf16.gmra.mxu0 %v354
  %v484 = vpop.f32.mrf.mxu0
  %v485 = vadd.f32 %v140, %v484
  %v486 = vpop.f32.mrf.mxu0
  %v487 = vadd.f32 %v140, %v486
  %488 = vmatmul.bf16.gmra.mxu0 %v357
  %v489 = vpop.f32.mrf.mxu0
  %v490 = vadd.f32 %v140, %v489
  %v491 = vpop.f32.mrf.mxu0
  %v492 = vadd.f32 %v140, %v491
  %493 = vmatmul.bf16.gmra.mxu0 %v360
  %v494 = vpop.f32.mrf.mxu0
  %v495 = vadd.f32 %v140, %v494
  %v496 = vpop.f32.mrf.mxu0
  %v497 = vadd.f32 %v140, %v496
  %498 = vmatmul.bf16.gmra.mxu0 %v363
  %v499 = vpop.f32.mrf.mxu0
  %v500 = vadd.f32 %v140, %v499
  %v501 = vpop.f32.mrf.mxu0
  %v502 = vadd.f32 %v140, %v501
  %503 = vmatmul.bf16.gmra.mxu0 %v366
  %v504 = vpop.f32.mrf.mxu0
  %v505 = vadd.f32 %v140, %v504
  %v506 = vpop.f32.mrf.mxu0
  %v507 = vadd.f32 %v140, %v506
  %508 = vmatmul.bf16.gmra.mxu0 %v369
  %v509 = vpop.f32.mrf.mxu0
  %v510 = vadd.f32 %v140, %v509
  %v511 = vpop.f32.mrf.mxu0
  %v512 = vadd.f32 %v140, %v511
  %513 = vmatmul.bf16.gmra.mxu0 %v372
  %v514 = vpop.f32.mrf.mxu0
  %v515 = vadd.f32 %v140, %v514
  %v516 = vpop.f32.mrf.mxu0
  %v517 = vadd.f32 %v140, %v516
  %518 = vmatmul.bf16.gmra.mxu0 %v375
  %v519 = vpop.f32.mrf.mxu0
  %v520 = vadd.f32 %v140, %v519
  %v521 = vpop.f32.mrf.mxu0
  %v522 = vadd.f32 %v140, %v521
  %523 = vmatmul.bf16.gmra.mxu0 %v378
  %v524 = vpop.f32.mrf.mxu0
  %v525 = vadd.f32 %v140, %v524
  %v526 = vpop.f32.mrf.mxu0
  %v527 = vadd.f32 %v140, %v526
  %528 = vmatmul.bf16.gmra.mxu0 %v381
  %v529 = vpop.f32.mrf.mxu0
  %v530 = vadd.f32 %v140, %v529
  %v531 = vpop.f32.mrf.mxu0
  %v532 = vadd.f32 %v140, %v531
  %533 = vmatmul.bf16.gmra.mxu0 %v384
  %v534 = vpop.f32.mrf.mxu0
  %v535 = vadd.f32 %v140, %v534
  %v536 = vpop.f32.mrf.mxu0
  %v537 = vadd.f32 %v140, %v536
  %538 = vmatmul.bf16.gmra.mxu0 %v387
  %v539 = vpop.f32.mrf.mxu0
  %v540 = vadd.f32 %v140, %v539
  %v541 = vpop.f32.mrf.mxu0
  %v542 = vadd.f32 %v140, %v541
  %543 = vmatmul.bf16.gmra.mxu0 %v390
  %v544 = vpop.f32.mrf.mxu0
  %v545 = vadd.f32 %v140, %v544
  %v546 = vpop.f32.mrf.mxu0
  %v547 = vadd.f32 %v140, %v546
  %548 = vmatmul.bf16.gmra.mxu0 %v393
  %v549 = vpop.f32.mrf.mxu0
  %v550 = vadd.f32 %v140, %v549
  %v551 = vpop.f32.mrf.mxu0
  %v552 = vadd.f32 %v140, %v551
  %553 = vmatmul.bf16.gmra.mxu0 %v396
  %v554 = vpop.f32.mrf.mxu0
  %v555 = vadd.f32 %v140, %v554
  %v556 = vpop.f32.mrf.mxu0
  %v557 = vadd.f32 %v140, %v556
  %558 = vmatmul.bf16.gmra.mxu0 %v399
  %v559 = vpop.f32.mrf.mxu0
  %v560 = vadd.f32 %v140, %v559
  %v561 = vpop.f32.mrf.mxu0
  %v562 = vadd.f32 %v140, %v561
  %563 = vmatmul.bf16.gmra.mxu0 %v402
  %v564 = vpop.f32.mrf.mxu0
  %v565 = vadd.f32 %v140, %v564
  %v566 = vpop.f32.mrf.mxu0
  %v567 = vadd.f32 %v140, %v566
  %568 = vmatmul.bf16.gmra.mxu0 %v405
  %v569 = vpop.f32.mrf.mxu0
  %v570 = vadd.f32 %v140, %v569
  %v571 = vpop.f32.mrf.mxu0
  %v572 = vadd.f32 %v140, %v571
  %573 = vmatmul.bf16.gmra.mxu0 %v408
  %v574 = vpop.f32.mrf.mxu0
  %v575 = vadd.f32 %v140, %v574
  %v576 = vpop.f32.mrf.mxu0
  %v577 = vadd.f32 %v140, %v576
  %578 = vmatmul.bf16.gmra.mxu0 %v411
  %v579 = vpop.f32.mrf.mxu0
  %v580 = vadd.f32 %v140, %v579
  %v581 = vpop.f32.mrf.mxu0
  %v582 = vadd.f32 %v140, %v581
  %583 = vmatmul.bf16.gmra.mxu0 %v414
  %v584 = vpop.f32.mrf.mxu0
  %v585 = vadd.f32 %v140, %v584
  %v586 = vpop.f32.mrf.mxu0
  %v587 = vadd.f32 %v140, %v586
  %588 = vdwg.mxu0
  %v589 = vmax.f32 %v430, 0.0
  %v590 = vmax.f32 %v432, 0.0
  %v591 = vmax.f32 %v435, 0.0
  %v592 = vmax.f32 %v437, 0.0
  %v593 = vmax.f32 %v440, 0.0
  %v594 = vmax.f32 %v442, 0.0
  %v595 = vmax.f32 %v445, 0.0
  %v596 = vmax.f32 %v447, 0.0
  %v597 = vmax.f32 %v450, 0.0
  %v598 = vmax.f32 %v452, 0.0
  %v599 = vmax.f32 %v455, 0.0
  %v600 = vmax.f32 %v457, 0.0
  %v601 = vmax.f32 %v460, 0.0
  %v602 = vmax.f32 %v462, 0.0
  %v603 = vmax.f32 %v465, 0.0
  %v604 = vmax.f32 %v467, 0.0
  %v605 = vmax.f32 %v470, 0.0
  %v606 = vmax.f32 %v472, 0.0
  %v607 = vmax.f32 %v475, 0.0
  %v608 = vmax.f32 %v477, 0.0
  %v609 = vmax.f32 %v480, 0.0
  %v610 = vmax.f32 %v482, 0.0
  %v611 = vmax.f32 %v485, 0.0
  %v612 = vmax.f32 %v487, 0.0
  %v613 = vmax.f32 %v490, 0.0
  %v614 = vmax.f32 %v492, 0.0
  %v615 = vmax.f32 %v495, 0.0
  %v616 = vmax.f32 %v497, 0.0
  %v617 = vmax.f32 %v500, 0.0
  %v618 = vmax.f32 %v502, 0.0
  %v619 = vmax.f32 %v505, 0.0
  %v620 = vmax.f32 %v507, 0.0
  %v621 = vmax.f32 %v510, 0.0
  %v622 = vmax.f32 %v512, 0.0
  %v623 = vmax.f32 %v515, 0.0
  %v624 = vmax.f32 %v517, 0.0
  %v625 = vmax.f32 %v520, 0.0
  %v626 = vmax.f32 %v522, 0.0
  %v627 = vmax.f32 %v525, 0.0
  %v628 = vmax.f32 %v527, 0.0
  %v629 = vmax.f32 %v530, 0.0
  %v630 = vmax.f32 %v532, 0.0
  %v631 = vmax.f32 %v535, 0.0
  %v632 = vmax.f32 %v537, 0.0
  %v633 = vmax.f32 %v540, 0.0
  %v634 = vmax.f32 %v542, 0.0
  %v635 = vmax.f32 %v545, 0.0
  %v636 = vmax.f32 %v547, 0.0
  %v637 = vmax.f32 %v550, 0.0
  %v638 = vmax.f32 %v552, 0.0
  %v639 = vmax.f32 %v555, 0.0
  %v640 = vmax.f32 %v557, 0.0
  %v641 = vmax.f32 %v560, 0.0
  %v642 = vmax.f32 %v562, 0.0
  %v643 = vmax.f32 %v565, 0.0
  %v644 = vmax.f32 %v567, 0.0
  %v645 = vmax.f32 %v570, 0.0
  %v646 = vmax.f32 %v572, 0.0
  %v647 = vmax.f32 %v575, 0.0
  %v648 = vmax.f32 %v577, 0.0
  %v649 = vmax.f32 %v580, 0.0
  %v650 = vmax.f32 %v582, 0.0
  %v651 = vmax.f32 %v585, 0.0
  %v652 = vmax.f32 %v587, 0.0
  %v653 = vpack.c.bf16 %v590, %v589
  %v654 = vpack.c.bf16 %v592, %v591
  %v655 = vpack.c.bf16 %v594, %v593
  %v656 = vpack.c.bf16 %v596, %v595
  %v657 = vpack.c.bf16 %v598, %v597
  %v658 = vpack.c.bf16 %v600, %v599
  %v659 = vpack.c.bf16 %v602, %v601
  %v660 = vpack.c.bf16 %v604, %v603
  %v661 = vpack.c.bf16 %v606, %v605
  %v662 = vpack.c.bf16 %v608, %v607
  %v663 = vpack.c.bf16 %v610, %v609
  %v664 = vpack.c.bf16 %v612, %v611
  %v665 = vpack.c.bf16 %v614, %v613
  %v666 = vpack.c.bf16 %v616, %v615
  %v667 = vpack.c.bf16 %v618, %v617
  %v668 = vpack.c.bf16 %v620, %v619
  %v669 = vpack.c.bf16 %v622, %v621
  %v670 = vpack.c.bf16 %v624, %v623
  %v671 = vpack.c.bf16 %v626, %v625
  %v672 = vpack.c.bf16 %v628, %v627
  %v673 = vpack.c.bf16 %v630, %v629
  %v674 = vpack.c.bf16 %v632, %v631
  %v675 = vpack.c.bf16 %v634, %v633
  %v676 = vpack.c.bf16 %v636, %v635
  %v677 = vpack.c.bf16 %v638, %v637
  %v678 = vpack.c.bf16 %v640, %v639
  %v679 = vpack.c.bf16 %v642, %v641
  %v680 = vpack.c.bf16 %v644, %v643
  %v681 = vpack.c.bf16 %v646, %v645
  %v682 = vpack.c.bf16 %v648, %v647
  %v683 = vpack.c.bf16 %v650, %v649
  %v684 = vpack.c.bf16 %v652, %v651
  %v685 = vld [vmem:[%s4] sm:$0xf]
  %v686 = vld [vmem:[%s4 + $0x4] sm:$0xf]
  %v687 = vld [vmem:[%s4 + $0x8] sm:$0xf]
  %v688 = vld [vmem:[%s4 + $0xc] sm:$0xf]
  %v689 = vld [vmem:[%s4 + $0x10] sm:$0xf]
  %v690 = vld [vmem:[%s4 + $0x14] sm:$0xf]
  %v691 = vld [vmem:[%s4 + $0x18] sm:$0xf]
  %v692 = vld [vmem:[%s4 + $0x1c] sm:$0xf]
  %v693 = vld [vmem:[%s5] sm:$0x1]
  %v695 = vperm.slane %v693, 0
  %v705 = vunpack.c.l.b16 %v685
  %v706 = vunpack.c.l.b16 %v686
  %v707 = vunpack.c.l.b16 %v687
  %v708 = vunpack.c.l.b16 %v688
  %v709 = vunpack.c.l.b16 %v689
  %v710 = vunpack.c.l.b16 %v690
  %v711 = vunpack.c.l.b16 %v691
  %v712 = vunpack.c.l.b16 %v692
  %v713 = vpack.c.b16 %v706, %v705
  %v714 = vpack.c.b16 %v708, %v707
  %v715 = vpack.c.b16 %v710, %v709
  %v716 = vpack.c.b16 %v712, %v711
  %vm721 = vcmask 523264
  %v723 = vsel %vm721, %v653, 0
  %v726 = vsel %vm721, %v654, 0
  %v729 = vsel %vm721, %v655, 0
  %v732 = vsel %vm721, %v656, 0
  %v735 = vsel %vm721, %v657, 0
  %v738 = vsel %vm721, %v658, 0
  %v741 = vsel %vm721, %v659, 0
  %v744 = vsel %vm721, %v660, 0
  %v747 = vsel %vm721, %v661, 0
  %v750 = vsel %vm721, %v662, 0
  %v753 = vsel %vm721, %v663, 0
  %v756 = vsel %vm721, %v664, 0
  %v759 = vsel %vm721, %v665, 0
  %v762 = vsel %vm721, %v666, 0
  %v765 = vsel %vm721, %v667, 0
  %v768 = vsel %vm721, %v668, 0
  %v771 = vsel %vm721, %v669, 0
  %v774 = vsel %vm721, %v670, 0
  %v777 = vsel %vm721, %v671, 0
  %v780 = vsel %vm721, %v672, 0
  %v783 = vsel %vm721, %v673, 0
  %v786 = vsel %vm721, %v674, 0
  %v789 = vsel %vm721, %v675, 0
  %v792 = vsel %vm721, %v676, 0
  %v795 = vsel %vm721, %v677, 0
  %v798 = vsel %vm721, %v678, 0
  %v801 = vsel %vm721, %v679, 0
  %v804 = vsel %vm721, %v680, 0
  %v807 = vsel %vm721, %v681, 0
  %v810 = vsel %vm721, %v682, 0
  %v813 = vsel %vm721, %v683, 0
  %v816 = vsel %vm721, %v684, 0
  %818 = vmatpush.bf16.msra.mxu0 0
  %819 = vmatpush.bf16.msra.mxu0 0
  %820 = vmatpush.bf16.msra.mxu0 0
  %821 = vmatpush.bf16.msra.mxu0 0
  %822 = vmatpush.bf16.msra.mxu0 %v716
  %823 = vmatpush.bf16.msra.mxu0 %v715
  %824 = vmatpush.bf16.msra.mxu0 %v714
  %825 = vmatpush.bf16.msra.mxu0 %v713
  %826 = vmatmul.bf16.gmra.mxu0 %v723
  %v827 = vpop.f32.mrf.mxu0
  %v828 = vadd.f32 %v695, %v827
  %v829 = vpop.f32.mrf.mxu0
  %v830 = vadd.f32 %v695, %v829
  %831 = vmatmul.bf16.gmra.mxu0 %v726
  %v832 = vpop.f32.mrf.mxu0
  %v833 = vadd.f32 %v695, %v832
  %v834 = vpop.f32.mrf.mxu0
  %v835 = vadd.f32 %v695, %v834
  %836 = vmatmul.bf16.gmra.mxu0 %v729
  %v837 = vpop.f32.mrf.mxu0
  %v838 = vadd.f32 %v695, %v837
  %v839 = vpop.f32.mrf.mxu0
  %v840 = vadd.f32 %v695, %v839
  %841 = vmatmul.bf16.gmra.mxu0 %v732
  %v842 = vpop.f32.mrf.mxu0
  %v843 = vadd.f32 %v695, %v842
  %v844 = vpop.f32.mrf.mxu0
  %v845 = vadd.f32 %v695, %v844
  %846 = vmatmul.bf16.gmra.mxu0 %v735
  %v847 = vpop.f32.mrf.mxu0
  %v848 = vadd.f32 %v695, %v847
  %v849 = vpop.f32.mrf.mxu0
  %v850 = vadd.f32 %v695, %v849
  %851 = vmatmul.bf16.gmra.mxu0 %v738
  %v852 = vpop.f32.mrf.mxu0
  %v853 = vadd.f32 %v695, %v852
  %v854 = vpop.f32.mrf.mxu0
  %v855 = vadd.f32 %v695, %v854
  %856 = vmatmul.bf16.gmra.mxu0 %v741
  %v857 = vpop.f32.mrf.mxu0
  %v858 = vadd.f32 %v695, %v857
  %v859 = vpop.f32.mrf.mxu0
  %v860 = vadd.f32 %v695, %v859
  %861 = vmatmul.bf16.gmra.mxu0 %v744
  %v862 = vpop.f32.mrf.mxu0
  %v863 = vadd.f32 %v695, %v862
  %v864 = vpop.f32.mrf.mxu0
  %v865 = vadd.f32 %v695, %v864
  %866 = vmatmul.bf16.gmra.mxu0 %v747
  %v867 = vpop.f32.mrf.mxu0
  %v868 = vadd.f32 %v695, %v867
  %v869 = vpop.f32.mrf.mxu0
  %v870 = vadd.f32 %v695, %v869
  %871 = vmatmul.bf16.gmra.mxu0 %v750
  %v872 = vpop.f32.mrf.mxu0
  %v873 = vadd.f32 %v695, %v872
  %v874 = vpop.f32.mrf.mxu0
  %v875 = vadd.f32 %v695, %v874
  %876 = vmatmul.bf16.gmra.mxu0 %v753
  %v877 = vpop.f32.mrf.mxu0
  %v878 = vadd.f32 %v695, %v877
  %v879 = vpop.f32.mrf.mxu0
  %v880 = vadd.f32 %v695, %v879
  %881 = vmatmul.bf16.gmra.mxu0 %v756
  %v882 = vpop.f32.mrf.mxu0
  %v883 = vadd.f32 %v695, %v882
  %v884 = vpop.f32.mrf.mxu0
  %v885 = vadd.f32 %v695, %v884
  %886 = vmatmul.bf16.gmra.mxu0 %v759
  %v887 = vpop.f32.mrf.mxu0
  %v888 = vadd.f32 %v695, %v887
  %v889 = vpop.f32.mrf.mxu0
  %v890 = vadd.f32 %v695, %v889
  %891 = vmatmul.bf16.gmra.mxu0 %v762
  %v892 = vpop.f32.mrf.mxu0
  %v893 = vadd.f32 %v695, %v892
  %v894 = vpop.f32.mrf.mxu0
  %v895 = vadd.f32 %v695, %v894
  %896 = vmatmul.bf16.gmra.mxu0 %v765
  %v897 = vpop.f32.mrf.mxu0
  %v898 = vadd.f32 %v695, %v897
  %v899 = vpop.f32.mrf.mxu0
  %v900 = vadd.f32 %v695, %v899
  %901 = vmatmul.bf16.gmra.mxu0 %v768
  %v902 = vpop.f32.mrf.mxu0
  %v903 = vadd.f32 %v695, %v902
  %v904 = vpop.f32.mrf.mxu0
  %v905 = vadd.f32 %v695, %v904
  %906 = vmatmul.bf16.gmra.mxu0 %v771
  %v907 = vpop.f32.mrf.mxu0
  %v908 = vadd.f32 %v695, %v907
  %v909 = vpop.f32.mrf.mxu0
  %v910 = vadd.f32 %v695, %v909
  %911 = vmatmul.bf16.gmra.mxu0 %v774
  %v912 = vpop.f32.mrf.mxu0
  %v913 = vadd.f32 %v695, %v912
  %v914 = vpop.f32.mrf.mxu0
  %v915 = vadd.f32 %v695, %v914
  %916 = vmatmul.bf16.gmra.mxu0 %v777
  %v917 = vpop.f32.mrf.mxu0
  %v918 = vadd.f32 %v695, %v917
  %v919 = vpop.f32.mrf.mxu0
  %v920 = vadd.f32 %v695, %v919
  %921 = vmatmul.bf16.gmra.mxu0 %v780
  %v922 = vpop.f32.mrf.mxu0
  %v923 = vadd.f32 %v695, %v922
  %v924 = vpop.f32.mrf.mxu0
  %v925 = vadd.f32 %v695, %v924
  %926 = vmatmul.bf16.gmra.mxu0 %v783
  %v927 = vpop.f32.mrf.mxu0
  %v928 = vadd.f32 %v695, %v927
  %v929 = vpop.f32.mrf.mxu0
  %v930 = vadd.f32 %v695, %v929
  %931 = vmatmul.bf16.gmra.mxu0 %v786
  %v932 = vpop.f32.mrf.mxu0
  %v933 = vadd.f32 %v695, %v932
  %v934 = vpop.f32.mrf.mxu0
  %v935 = vadd.f32 %v695, %v934
  %936 = vmatmul.bf16.gmra.mxu0 %v789
  %v937 = vpop.f32.mrf.mxu0
  %v938 = vadd.f32 %v695, %v937
  %v939 = vpop.f32.mrf.mxu0
  %v940 = vadd.f32 %v695, %v939
  %941 = vmatmul.bf16.gmra.mxu0 %v792
  %v942 = vpop.f32.mrf.mxu0
  %v943 = vadd.f32 %v695, %v942
  %v944 = vpop.f32.mrf.mxu0
  %v945 = vadd.f32 %v695, %v944
  %946 = vmatmul.bf16.gmra.mxu0 %v795
  %v947 = vpop.f32.mrf.mxu0
  %v948 = vadd.f32 %v695, %v947
  %v949 = vpop.f32.mrf.mxu0
  %v950 = vadd.f32 %v695, %v949
  %951 = vmatmul.bf16.gmra.mxu0 %v798
  %v952 = vpop.f32.mrf.mxu0
  %v953 = vadd.f32 %v695, %v952
  %v954 = vpop.f32.mrf.mxu0
  %v955 = vadd.f32 %v695, %v954
  %956 = vmatmul.bf16.gmra.mxu0 %v801
  %v957 = vpop.f32.mrf.mxu0
  %v958 = vadd.f32 %v695, %v957
  %v959 = vpop.f32.mrf.mxu0
  %v960 = vadd.f32 %v695, %v959
  %961 = vmatmul.bf16.gmra.mxu0 %v804
  %v962 = vpop.f32.mrf.mxu0
  %v963 = vadd.f32 %v695, %v962
  %v964 = vpop.f32.mrf.mxu0
  %v965 = vadd.f32 %v695, %v964
  %966 = vmatmul.bf16.gmra.mxu0 %v807
  %v967 = vpop.f32.mrf.mxu0
  %v968 = vadd.f32 %v695, %v967
  %v969 = vpop.f32.mrf.mxu0
  %v970 = vadd.f32 %v695, %v969
  %971 = vmatmul.bf16.gmra.mxu0 %v810
  %v972 = vpop.f32.mrf.mxu0
  %v973 = vadd.f32 %v695, %v972
  %v974 = vpop.f32.mrf.mxu0
  %v975 = vadd.f32 %v695, %v974
  %976 = vmatmul.bf16.gmra.mxu0 %v813
  %v977 = vpop.f32.mrf.mxu0
  %v978 = vadd.f32 %v695, %v977
  %v979 = vpop.f32.mrf.mxu0
  %v980 = vadd.f32 %v695, %v979
  %981 = vmatmul.bf16.gmra.mxu0 %v816
  %v982 = vpop.f32.mrf.mxu0
  %v983 = vadd.f32 %v695, %v982
  %v984 = vpop.f32.mrf.mxu0
  %v985 = vadd.f32 %v695, %v984
  %986 = vdwg.mxu0
  %v987 = vunpack.c.l.bf16 %v68
  %v988 = vunpack.c.l.bf16 %v69
  %v989 = vunpack.c.l.bf16 %v70
  %v990 = vunpack.c.l.bf16 %v71
  %v991 = vunpack.c.l.bf16 %v72
  %v992 = vunpack.c.l.bf16 %v73
  %v993 = vunpack.c.l.bf16 %v74
  %v994 = vunpack.c.l.bf16 %v75
  %v995 = vunpack.c.l.bf16 %v76
  %v996 = vunpack.c.l.bf16 %v77
  %v997 = vunpack.c.l.bf16 %v78
  %v998 = vunpack.c.l.bf16 %v79
  %v999 = vunpack.c.l.bf16 %v80
  %v1000 = vunpack.c.l.bf16 %v81
  %v1001 = vunpack.c.l.bf16 %v82
  %v1002 = vunpack.c.l.bf16 %v83
  %v1003 = vmul.f32 %v987, %v828
  %v1004 = vmul.f32 %v988, %v830
  %v1005 = vmul.f32 %v989, %v833
  %v1006 = vmul.f32 %v990, %v835
  %v1007 = vmul.f32 %v991, %v838
  %v1008 = vmul.f32 %v992, %v840
  %v1009 = vmul.f32 %v993, %v843
  %v1010 = vmul.f32 %v994, %v845
  %v1011 = vmul.f32 %v995, %v848
  %v1012 = vmul.f32 %v996, %v850
  %v1013 = vmul.f32 %v997, %v853
  %v1014 = vmul.f32 %v998, %v855
  %v1015 = vmul.f32 %v999, %v858
  %v1016 = vmul.f32 %v1000, %v860
  %v1017 = vmul.f32 %v1001, %v863
  %v1018 = vmul.f32 %v1002, %v865
  %v1019 = vmul.f32 %v52, %v1003
  %v1020 = vmul.f32 %v53, %v1004
  %v1021 = vmul.f32 %v54, %v1005
  %v1022 = vmul.f32 %v55, %v1006
  %v1023 = vmul.f32 %v56, %v1007
  %v1024 = vmul.f32 %v57, %v1008
  %v1025 = vmul.f32 %v58, %v1009
  %v1026 = vmul.f32 %v59, %v1010
  %v1027 = vmul.f32 %v60, %v1011
  %v1028 = vmul.f32 %v61, %v1012
  %v1029 = vmul.f32 %v62, %v1013
  %v1030 = vmul.f32 %v63, %v1014
  %v1031 = vmul.f32 %v64, %v1015
  %v1032 = vmul.f32 %v65, %v1016
  %v1033 = vmul.f32 %v66, %v1017
  %v1034 = vmul.f32 %v67, %v1018
  %vm1035 = vcmask 293888
  %v1036 = vsel %vm1035, %v1019, 0.0
  %1037 = vadd.xlane.f32.xlu0 %v1036
  %v1038 = vpop.xlane.xlu0 %1037
  %v1039 = vsel %vm1035, %v1020, 0.0
  %1040 = vadd.xlane.f32.xlu0 %v1039
  %v1041 = vpop.xlane.xlu0 %1040
  %v1042 = vsel %vm1035, %v1021, 0.0
  %1043 = vadd.xlane.f32.xlu0 %v1042
  %v1044 = vpop.xlane.xlu0 %1043
  %v1045 = vsel %vm1035, %v1022, 0.0
  %1046 = vadd.xlane.f32.xlu0 %v1045
  %v1047 = vpop.xlane.xlu0 %1046
  %v1048 = vsel %vm1035, %v1023, 0.0
  %1049 = vadd.xlane.f32.xlu0 %v1048
  %v1050 = vpop.xlane.xlu0 %1049
  %v1051 = vsel %vm1035, %v1024, 0.0
  %1052 = vadd.xlane.f32.xlu0 %v1051
  %v1053 = vpop.xlane.xlu0 %1052
  %v1054 = vsel %vm1035, %v1025, 0.0
  %1055 = vadd.xlane.f32.xlu0 %v1054
  %v1056 = vpop.xlane.xlu0 %1055
  %v1057 = vsel %vm1035, %v1026, 0.0
  %1058 = vadd.xlane.f32.xlu0 %v1057
  %v1059 = vpop.xlane.xlu0 %1058
  %v1060 = vsel %vm1035, %v1027, 0.0
  %1061 = vadd.xlane.f32.xlu0 %v1060
  %v1062 = vpop.xlane.xlu0 %1061
  %v1063 = vsel %vm1035, %v1028, 0.0
  %1064 = vadd.xlane.f32.xlu0 %v1063
  %v1065 = vpop.xlane.xlu0 %1064
  %v1066 = vsel %vm1035, %v1029, 0.0
  %1067 = vadd.xlane.f32.xlu0 %v1066
  %v1068 = vpop.xlane.xlu0 %1067
  %v1069 = vsel %vm1035, %v1030, 0.0
  %1070 = vadd.xlane.f32.xlu0 %v1069
  %v1071 = vpop.xlane.xlu0 %1070
  %v1072 = vsel %vm1035, %v1031, 0.0
  %1073 = vadd.xlane.f32.xlu0 %v1072
  %v1074 = vpop.xlane.xlu0 %1073
  %v1075 = vsel %vm1035, %v1032, 0.0
  %1076 = vadd.xlane.f32.xlu0 %v1075
  %v1077 = vpop.xlane.xlu0 %1076
  %v1078 = vsel %vm1035, %v1033, 0.0
  %1079 = vadd.xlane.f32.xlu0 %v1078
  %v1080 = vpop.xlane.xlu0 %1079
  %v1081 = vsel %vm1035, %v1034, 0.0
  %1082 = vadd.xlane.f32.xlu0 %v1081
  %v1083 = vpop.xlane.xlu0 %1082
  %1100 = vrot.lane.b32.xlu0 %v828, 92
  %v1101 = vpop.permute.xlu0 %1100
  %1102 = vrot.lane.b32.xlu0 %v830, 92
  %v1103 = vpop.permute.xlu0 %1102
  %1104 = vrot.lane.b32.xlu0 %v833, 92
  %v1105 = vpop.permute.xlu0 %1104
  %1106 = vrot.lane.b32.xlu0 %v835, 92
  %v1107 = vpop.permute.xlu0 %1106
  %1108 = vrot.lane.b32.xlu0 %v838, 92
  %v1109 = vpop.permute.xlu0 %1108
  %1110 = vrot.lane.b32.xlu0 %v840, 92
  %v1111 = vpop.permute.xlu0 %1110
  %1112 = vrot.lane.b32.xlu0 %v843, 92
  %v1113 = vpop.permute.xlu0 %1112
  %1114 = vrot.lane.b32.xlu0 %v845, 92
  %v1115 = vpop.permute.xlu0 %1114
  %1116 = vrot.lane.b32.xlu0 %v848, 92
  %v1117 = vpop.permute.xlu0 %1116
  %1118 = vrot.lane.b32.xlu0 %v850, 92
  %v1119 = vpop.permute.xlu0 %1118
  %1120 = vrot.lane.b32.xlu0 %v853, 92
  %v1121 = vpop.permute.xlu0 %1120
  %1122 = vrot.lane.b32.xlu0 %v855, 92
  %v1123 = vpop.permute.xlu0 %1122
  %1124 = vrot.lane.b32.xlu0 %v858, 92
  %v1125 = vpop.permute.xlu0 %1124
  %1126 = vrot.lane.b32.xlu0 %v860, 92
  %v1127 = vpop.permute.xlu0 %1126
  %1128 = vrot.lane.b32.xlu0 %v863, 92
  %v1129 = vpop.permute.xlu0 %1128
  %1130 = vrot.lane.b32.xlu0 %v865, 92
  %v1131 = vpop.permute.xlu0 %1130
  %v1148 = vmul.f32 %v987, %v1101
  %v1149 = vmul.f32 %v988, %v1103
  %v1150 = vmul.f32 %v989, %v1105
  %v1151 = vmul.f32 %v990, %v1107
  %v1152 = vmul.f32 %v991, %v1109
  %v1153 = vmul.f32 %v992, %v1111
  %v1154 = vmul.f32 %v993, %v1113
  %v1155 = vmul.f32 %v994, %v1115
  %v1156 = vmul.f32 %v995, %v1117
  %v1157 = vmul.f32 %v996, %v1119
  %v1158 = vmul.f32 %v997, %v1121
  %v1159 = vmul.f32 %v998, %v1123
  %v1160 = vmul.f32 %v999, %v1125
  %v1161 = vmul.f32 %v1000, %v1127
  %v1162 = vmul.f32 %v1001, %v1129
  %v1163 = vmul.f32 %v1002, %v1131
  %v1164 = vunpack.c.l.bf16 %v84
  %v1165 = vunpack.c.l.bf16 %v85
  %v1166 = vunpack.c.l.bf16 %v86
  %v1167 = vunpack.c.l.bf16 %v87
  %v1168 = vunpack.c.l.bf16 %v88
  %v1169 = vunpack.c.l.bf16 %v89
  %v1170 = vunpack.c.l.bf16 %v90
  %v1171 = vunpack.c.l.bf16 %v91
  %v1172 = vunpack.c.l.bf16 %v92
  %v1173 = vunpack.c.l.bf16 %v93
  %v1174 = vunpack.c.l.bf16 %v94
  %v1175 = vunpack.c.l.bf16 %v95
  %v1176 = vunpack.c.l.bf16 %v96
  %v1177 = vunpack.c.l.bf16 %v97
  %v1178 = vunpack.c.l.bf16 %v98
  %v1179 = vunpack.c.l.bf16 %v99
  %v1180 = vmul.f32 %v1164, %v868
  %v1181 = vmul.f32 %v1165, %v870
  %v1182 = vmul.f32 %v1166, %v873
  %v1183 = vmul.f32 %v1167, %v875
  %v1184 = vmul.f32 %v1168, %v878
  %v1185 = vmul.f32 %v1169, %v880
  %v1186 = vmul.f32 %v1170, %v883
  %v1187 = vmul.f32 %v1171, %v885
  %v1188 = vmul.f32 %v1172, %v888
  %v1189 = vmul.f32 %v1173, %v890
  %v1190 = vmul.f32 %v1174, %v893
  %v1191 = vmul.f32 %v1175, %v895
  %v1192 = vmul.f32 %v1176, %v898
  %v1193 = vmul.f32 %v1177, %v900
  %v1194 = vmul.f32 %v1178, %v903
  %v1195 = vmul.f32 %v1179, %v905
  %v1196 = vmul.f32 %v52, %v1180
  %v1197 = vmul.f32 %v53, %v1181
  %v1198 = vmul.f32 %v54, %v1182
  %v1199 = vmul.f32 %v55, %v1183
  %v1200 = vmul.f32 %v56, %v1184
  %v1201 = vmul.f32 %v57, %v1185
  %v1202 = vmul.f32 %v58, %v1186
  %v1203 = vmul.f32 %v59, %v1187
  %v1204 = vmul.f32 %v60, %v1188
  %v1205 = vmul.f32 %v61, %v1189
  %v1206 = vmul.f32 %v62, %v1190
  %v1207 = vmul.f32 %v63, %v1191
  %v1208 = vmul.f32 %v64, %v1192
  %v1209 = vmul.f32 %v65, %v1193
  %v1210 = vmul.f32 %v66, %v1194
  %v1211 = vmul.f32 %v67, %v1195
  %v1212 = vsel %vm1035, %v1196, 0.0
  %1213 = vadd.xlane.f32.xlu0 %v1212
  %v1214 = vpop.xlane.xlu0 %1213
  %v1215 = vsel %vm1035, %v1197, 0.0
  %1216 = vadd.xlane.f32.xlu0 %v1215
  %v1217 = vpop.xlane.xlu0 %1216
  %v1218 = vsel %vm1035, %v1198, 0.0
  %1219 = vadd.xlane.f32.xlu0 %v1218
  %v1220 = vpop.xlane.xlu0 %1219
  %v1221 = vsel %vm1035, %v1199, 0.0
  %1222 = vadd.xlane.f32.xlu0 %v1221
  %v1223 = vpop.xlane.xlu0 %1222
  %v1224 = vsel %vm1035, %v1200, 0.0
  %1225 = vadd.xlane.f32.xlu0 %v1224
  %v1226 = vpop.xlane.xlu0 %1225
  %v1227 = vsel %vm1035, %v1201, 0.0
  %1228 = vadd.xlane.f32.xlu0 %v1227
  %v1229 = vpop.xlane.xlu0 %1228
  %v1230 = vsel %vm1035, %v1202, 0.0
  %1231 = vadd.xlane.f32.xlu0 %v1230
  %v1232 = vpop.xlane.xlu0 %1231
  %v1233 = vsel %vm1035, %v1203, 0.0
  %1234 = vadd.xlane.f32.xlu0 %v1233
  %v1235 = vpop.xlane.xlu0 %1234
  %v1236 = vsel %vm1035, %v1204, 0.0
  %1237 = vadd.xlane.f32.xlu0 %v1236
  %v1238 = vpop.xlane.xlu0 %1237
  %v1239 = vsel %vm1035, %v1205, 0.0
  %1240 = vadd.xlane.f32.xlu0 %v1239
  %v1241 = vpop.xlane.xlu0 %1240
  %v1242 = vsel %vm1035, %v1206, 0.0
  %1243 = vadd.xlane.f32.xlu0 %v1242
  %v1244 = vpop.xlane.xlu0 %1243
  %v1245 = vsel %vm1035, %v1207, 0.0
  %1246 = vadd.xlane.f32.xlu0 %v1245
  %v1247 = vpop.xlane.xlu0 %1246
  %v1248 = vsel %vm1035, %v1208, 0.0
  %1249 = vadd.xlane.f32.xlu0 %v1248
  %v1250 = vpop.xlane.xlu0 %1249
  %v1251 = vsel %vm1035, %v1209, 0.0
  %1252 = vadd.xlane.f32.xlu0 %v1251
  %v1253 = vpop.xlane.xlu0 %1252
  %v1254 = vsel %vm1035, %v1210, 0.0
  %1255 = vadd.xlane.f32.xlu0 %v1254
  %v1256 = vpop.xlane.xlu0 %1255
  %v1257 = vsel %vm1035, %v1211, 0.0
  %1258 = vadd.xlane.f32.xlu0 %v1257
  %v1259 = vpop.xlane.xlu0 %1258
  %1276 = vrot.lane.b32.xlu0 %v868, 92
  %v1277 = vpop.permute.xlu0 %1276
  %1278 = vrot.lane.b32.xlu0 %v870, 92
  %v1279 = vpop.permute.xlu0 %1278
  %1280 = vrot.lane.b32.xlu0 %v873, 92
  %v1281 = vpop.permute.xlu0 %1280
  %1282 = vrot.lane.b32.xlu0 %v875, 92
  %v1283 = vpop.permute.xlu0 %1282
  %1284 = vrot.lane.b32.xlu0 %v878, 92
  %v1285 = vpop.permute.xlu0 %1284
  %1286 = vrot.lane.b32.xlu0 %v880, 92
  %v1287 = vpop.permute.xlu0 %1286
  %1288 = vrot.lane.b32.xlu0 %v883, 92
  %v1289 = vpop.permute.xlu0 %1288
  %1290 = vrot.lane.b32.xlu0 %v885, 92
  %v1291 = vpop.permute.xlu0 %1290
  %1292 = vrot.lane.b32.xlu0 %v888, 92
  %v1293 = vpop.permute.xlu0 %1292
  %1294 = vrot.lane.b32.xlu0 %v890, 92
  %v1295 = vpop.permute.xlu0 %1294
  %1296 = vrot.lane.b32.xlu0 %v893, 92
  %v1297 = vpop.permute.xlu0 %1296
  %1298 = vrot.lane.b32.xlu0 %v895, 92
  %v1299 = vpop.permute.xlu0 %1298
  %1300 = vrot.lane.b32.xlu0 %v898, 92
  %v1301 = vpop.permute.xlu0 %1300
  %1302 = vrot.lane.b32.xlu0 %v900, 92
  %v1303 = vpop.permute.xlu0 %1302
  %1304 = vrot.lane.b32.xlu0 %v903, 92
  %v1305 = vpop.permute.xlu0 %1304
  %1306 = vrot.lane.b32.xlu0 %v905, 92
  %v1307 = vpop.permute.xlu0 %1306
  %v1324 = vmul.f32 %v1164, %v1277
  %v1325 = vmul.f32 %v1165, %v1279
  %v1326 = vmul.f32 %v1166, %v1281
  %v1327 = vmul.f32 %v1167, %v1283
  %v1328 = vmul.f32 %v1168, %v1285
  %v1329 = vmul.f32 %v1169, %v1287
  %v1330 = vmul.f32 %v1170, %v1289
  %v1331 = vmul.f32 %v1171, %v1291
  %v1332 = vmul.f32 %v1172, %v1293
  %v1333 = vmul.f32 %v1173, %v1295
  %v1334 = vmul.f32 %v1174, %v1297
  %v1335 = vmul.f32 %v1175, %v1299
  %v1336 = vmul.f32 %v1176, %v1301
  %v1337 = vmul.f32 %v1177, %v1303
  %v1338 = vmul.f32 %v1178, %v1305
  %v1339 = vmul.f32 %v1179, %v1307
  %v1340 = vmax.f32 %v1038, %v1214
  %v1341 = vmax.f32 %v1041, %v1217
  %v1342 = vmax.f32 %v1044, %v1220
  %v1343 = vmax.f32 %v1047, %v1223
  %v1344 = vmax.f32 %v1050, %v1226
  %v1345 = vmax.f32 %v1053, %v1229
  %v1346 = vmax.f32 %v1056, %v1232
  %v1347 = vmax.f32 %v1059, %v1235
  %v1348 = vmax.f32 %v1062, %v1238
  %v1349 = vmax.f32 %v1065, %v1241
  %v1350 = vmax.f32 %v1068, %v1244
  %v1351 = vmax.f32 %v1071, %v1247
  %v1352 = vmax.f32 %v1074, %v1250
  %v1353 = vmax.f32 %v1077, %v1253
  %v1354 = vmax.f32 %v1080, %v1256
  %v1355 = vmax.f32 %v1083, %v1259
  %v1356 = vsub.f32 %v1038, %v1340
  %v1357 = vsub.f32 %v1041, %v1341
  %v1358 = vsub.f32 %v1044, %v1342
  %v1359 = vsub.f32 %v1047, %v1343
  %v1360 = vsub.f32 %v1050, %v1344
  %v1361 = vsub.f32 %v1053, %v1345
  %v1362 = vsub.f32 %v1056, %v1346
  %v1363 = vsub.f32 %v1059, %v1347
  %v1364 = vsub.f32 %v1062, %v1348
  %v1365 = vsub.f32 %v1065, %v1349
  %v1366 = vsub.f32 %v1068, %v1350
  %v1367 = vsub.f32 %v1071, %v1351
  %v1368 = vsub.f32 %v1074, %v1352
  %v1369 = vsub.f32 %v1077, %v1353
  %v1370 = vsub.f32 %v1080, %v1354
  %v1371 = vsub.f32 %v1083, %v1355
  %v1372 = vmul.f32 %v1356, 1.442695
  %v1373 = vpow.pop %v1372
  %v1374 = vmul.f32 %v1357, 1.442695
  %v1375 = vpow.pop %v1374
  %v1376 = vmul.f32 %v1358, 1.442695
  %v1377 = vpow.pop %v1376
  %v1378 = vmul.f32 %v1359, 1.442695
  %v1379 = vpow.pop %v1378
  %v1380 = vmul.f32 %v1360, 1.442695
  %v1381 = vpow.pop %v1380
  %v1382 = vmul.f32 %v1361, 1.442695
  %v1383 = vpow.pop %v1382
  %v1384 = vmul.f32 %v1362, 1.442695
  %v1385 = vpow.pop %v1384
  %v1386 = vmul.f32 %v1363, 1.442695
  %v1387 = vpow.pop %v1386
  %v1388 = vmul.f32 %v1364, 1.442695
  %v1389 = vpow.pop %v1388
  %v1390 = vmul.f32 %v1365, 1.442695
  %v1391 = vpow.pop %v1390
  %v1392 = vmul.f32 %v1366, 1.442695
  %v1393 = vpow.pop %v1392
  %v1394 = vmul.f32 %v1367, 1.442695
  %v1395 = vpow.pop %v1394
  %v1396 = vmul.f32 %v1368, 1.442695
  %v1397 = vpow.pop %v1396
  %v1398 = vmul.f32 %v1369, 1.442695
  %v1399 = vpow.pop %v1398
  %v1400 = vmul.f32 %v1370, 1.442695
  %v1401 = vpow.pop %v1400
  %v1402 = vmul.f32 %v1371, 1.442695
  %v1403 = vpow.pop %v1402
  %v1404 = vsub.f32 %v1214, %v1340
  %v1405 = vsub.f32 %v1217, %v1341
  %v1406 = vsub.f32 %v1220, %v1342
  %v1407 = vsub.f32 %v1223, %v1343
  %v1408 = vsub.f32 %v1226, %v1344
  %v1409 = vsub.f32 %v1229, %v1345
  %v1410 = vsub.f32 %v1232, %v1346
  %v1411 = vsub.f32 %v1235, %v1347
  %v1412 = vsub.f32 %v1238, %v1348
  %v1413 = vsub.f32 %v1241, %v1349
  %v1414 = vsub.f32 %v1244, %v1350
  %v1415 = vsub.f32 %v1247, %v1351
  %v1416 = vsub.f32 %v1250, %v1352
  %v1417 = vsub.f32 %v1253, %v1353
  %v1418 = vsub.f32 %v1256, %v1354
  %v1419 = vsub.f32 %v1259, %v1355
  %v1420 = vmul.f32 %v1404, 1.442695
  %v1421 = vpow.pop %v1420
  %v1422 = vmul.f32 %v1405, 1.442695
  %v1423 = vpow.pop %v1422
  %v1424 = vmul.f32 %v1406, 1.442695
  %v1425 = vpow.pop %v1424
  %v1426 = vmul.f32 %v1407, 1.442695
  %v1427 = vpow.pop %v1426
  %v1428 = vmul.f32 %v1408, 1.442695
  %v1429 = vpow.pop %v1428
  %v1430 = vmul.f32 %v1409, 1.442695
  %v1431 = vpow.pop %v1430
  %v1432 = vmul.f32 %v1410, 1.442695
  %v1433 = vpow.pop %v1432
  %v1434 = vmul.f32 %v1411, 1.442695
  %v1435 = vpow.pop %v1434
  %v1436 = vmul.f32 %v1412, 1.442695
  %v1437 = vpow.pop %v1436
  %v1438 = vmul.f32 %v1413, 1.442695
  %v1439 = vpow.pop %v1438
  %v1440 = vmul.f32 %v1414, 1.442695
  %v1441 = vpow.pop %v1440
  %v1442 = vmul.f32 %v1415, 1.442695
  %v1443 = vpow.pop %v1442
  %v1444 = vmul.f32 %v1416, 1.442695
  %v1445 = vpow.pop %v1444
  %v1446 = vmul.f32 %v1417, 1.442695
  %v1447 = vpow.pop %v1446
  %v1448 = vmul.f32 %v1418, 1.442695
  %v1449 = vpow.pop %v1448
  %v1450 = vmul.f32 %v1419, 1.442695
  %v1451 = vpow.pop %v1450
  %v1452 = vadd.f32 %v1373, %v1421
  %v1453 = vadd.f32 %v1375, %v1423
  %v1454 = vadd.f32 %v1377, %v1425
  %v1455 = vadd.f32 %v1379, %v1427
  %v1456 = vadd.f32 %v1381, %v1429
  %v1457 = vadd.f32 %v1383, %v1431
  %v1458 = vadd.f32 %v1385, %v1433
  %v1459 = vadd.f32 %v1387, %v1435
  %v1460 = vadd.f32 %v1389, %v1437
  %v1461 = vadd.f32 %v1391, %v1439
  %v1462 = vadd.f32 %v1393, %v1441
  %v1463 = vadd.f32 %v1395, %v1443
  %v1464 = vadd.f32 %v1397, %v1445
  %v1465 = vadd.f32 %v1399, %v1447
  %v1466 = vadd.f32 %v1401, %v1449
  %v1467 = vadd.f32 %v1403, %v1451
  %v1468 = vmul.f32 %v1373, %v1148
  %v1469 = vmul.f32 %v1375, %v1149
  %v1470 = vmul.f32 %v1377, %v1150
  %v1471 = vmul.f32 %v1379, %v1151
  %v1472 = vmul.f32 %v1381, %v1152
  %v1473 = vmul.f32 %v1383, %v1153
  %v1474 = vmul.f32 %v1385, %v1154
  %v1475 = vmul.f32 %v1387, %v1155
  %v1476 = vmul.f32 %v1389, %v1156
  %v1477 = vmul.f32 %v1391, %v1157
  %v1478 = vmul.f32 %v1393, %v1158
  %v1479 = vmul.f32 %v1395, %v1159
  %v1480 = vmul.f32 %v1397, %v1160
  %v1481 = vmul.f32 %v1399, %v1161
  %v1482 = vmul.f32 %v1401, %v1162
  %v1483 = vmul.f32 %v1403, %v1163
  %v1484 = vmul.f32 %v1421, %v1324
  %v1485 = vmul.f32 %v1423, %v1325
  %v1486 = vmul.f32 %v1425, %v1326
  %v1487 = vmul.f32 %v1427, %v1327
  %v1488 = vmul.f32 %v1429, %v1328
  %v1489 = vmul.f32 %v1431, %v1329
  %v1490 = vmul.f32 %v1433, %v1330
  %v1491 = vmul.f32 %v1435, %v1331
  %v1492 = vmul.f32 %v1437, %v1332
  %v1493 = vmul.f32 %v1439, %v1333
  %v1494 = vmul.f32 %v1441, %v1334
  %v1495 = vmul.f32 %v1443, %v1335
  %v1496 = vmul.f32 %v1445, %v1336
  %v1497 = vmul.f32 %v1447, %v1337
  %v1498 = vmul.f32 %v1449, %v1338
  %v1499 = vmul.f32 %v1451, %v1339
  %v1500 = vadd.f32 %v1468, %v1484
  %v1501 = vadd.f32 %v1469, %v1485
  %v1502 = vadd.f32 %v1470, %v1486
  %v1503 = vadd.f32 %v1471, %v1487
  %v1504 = vadd.f32 %v1472, %v1488
  %v1505 = vadd.f32 %v1473, %v1489
  %v1506 = vadd.f32 %v1474, %v1490
  %v1507 = vadd.f32 %v1475, %v1491
  %v1508 = vadd.f32 %v1476, %v1492
  %v1509 = vadd.f32 %v1477, %v1493
  %v1510 = vadd.f32 %v1478, %v1494
  %v1511 = vadd.f32 %v1479, %v1495
  %v1512 = vadd.f32 %v1480, %v1496
  %v1513 = vadd.f32 %v1481, %v1497
  %v1514 = vadd.f32 %v1482, %v1498
  %v1515 = vadd.f32 %v1483, %v1499
  %v1516 = vunpack.c.l.bf16 %v100
  %v1517 = vunpack.c.l.bf16 %v101
  %v1518 = vunpack.c.l.bf16 %v102
  %v1519 = vunpack.c.l.bf16 %v103
  %v1520 = vunpack.c.l.bf16 %v104
  %v1521 = vunpack.c.l.bf16 %v105
  %v1522 = vunpack.c.l.bf16 %v106
  %v1523 = vunpack.c.l.bf16 %v107
  %v1524 = vunpack.c.l.bf16 %v108
  %v1525 = vunpack.c.l.bf16 %v109
  %v1526 = vunpack.c.l.bf16 %v110
  %v1527 = vunpack.c.l.bf16 %v111
  %v1528 = vunpack.c.l.bf16 %v112
  %v1529 = vunpack.c.l.bf16 %v113
  %v1530 = vunpack.c.l.bf16 %v114
  %v1531 = vunpack.c.l.bf16 %v115
  %v1532 = vmul.f32 %v1516, %v908
  %v1533 = vmul.f32 %v1517, %v910
  %v1534 = vmul.f32 %v1518, %v913
  %v1535 = vmul.f32 %v1519, %v915
  %v1536 = vmul.f32 %v1520, %v918
  %v1537 = vmul.f32 %v1521, %v920
  %v1538 = vmul.f32 %v1522, %v923
  %v1539 = vmul.f32 %v1523, %v925
  %v1540 = vmul.f32 %v1524, %v928
  %v1541 = vmul.f32 %v1525, %v930
  %v1542 = vmul.f32 %v1526, %v933
  %v1543 = vmul.f32 %v1527, %v935
  %v1544 = vmul.f32 %v1528, %v938
  %v1545 = vmul.f32 %v1529, %v940
  %v1546 = vmul.f32 %v1530, %v943
  %v1547 = vmul.f32 %v1531, %v945
  %v1548 = vmul.f32 %v52, %v1532
  %v1549 = vmul.f32 %v53, %v1533
  %v1550 = vmul.f32 %v54, %v1534
  %v1551 = vmul.f32 %v55, %v1535
  %v1552 = vmul.f32 %v56, %v1536
  %v1553 = vmul.f32 %v57, %v1537
  %v1554 = vmul.f32 %v58, %v1538
  %v1555 = vmul.f32 %v59, %v1539
  %v1556 = vmul.f32 %v60, %v1540
  %v1557 = vmul.f32 %v61, %v1541
  %v1558 = vmul.f32 %v62, %v1542
  %v1559 = vmul.f32 %v63, %v1543
  %v1560 = vmul.f32 %v64, %v1544
  %v1561 = vmul.f32 %v65, %v1545
  %v1562 = vmul.f32 %v66, %v1546
  %v1563 = vmul.f32 %v67, %v1547
  %v1564 = vsel %vm1035, %v1548, 0.0
  %1565 = vadd.xlane.f32.xlu0 %v1564
  %v1566 = vpop.xlane.xlu0 %1565
  %v1567 = vsel %vm1035, %v1549, 0.0
  %1568 = vadd.xlane.f32.xlu0 %v1567
  %v1569 = vpop.xlane.xlu0 %1568
  %v1570 = vsel %vm1035, %v1550, 0.0
  %1571 = vadd.xlane.f32.xlu0 %v1570
  %v1572 = vpop.xlane.xlu0 %1571
  %v1573 = vsel %vm1035, %v1551, 0.0
  %1574 = vadd.xlane.f32.xlu0 %v1573
  %v1575 = vpop.xlane.xlu0 %1574
  %v1576 = vsel %vm1035, %v1552, 0.0
  %1577 = vadd.xlane.f32.xlu0 %v1576
  %v1578 = vpop.xlane.xlu0 %1577
  %v1579 = vsel %vm1035, %v1553, 0.0
  %1580 = vadd.xlane.f32.xlu0 %v1579
  %v1581 = vpop.xlane.xlu0 %1580
  %v1582 = vsel %vm1035, %v1554, 0.0
  %1583 = vadd.xlane.f32.xlu0 %v1582
  %v1584 = vpop.xlane.xlu0 %1583
  %v1585 = vsel %vm1035, %v1555, 0.0
  %1586 = vadd.xlane.f32.xlu0 %v1585
  %v1587 = vpop.xlane.xlu0 %1586
  %v1588 = vsel %vm1035, %v1556, 0.0
  %1589 = vadd.xlane.f32.xlu0 %v1588
  %v1590 = vpop.xlane.xlu0 %1589
  %v1591 = vsel %vm1035, %v1557, 0.0
  %1592 = vadd.xlane.f32.xlu0 %v1591
  %v1593 = vpop.xlane.xlu0 %1592
  %v1594 = vsel %vm1035, %v1558, 0.0
  %1595 = vadd.xlane.f32.xlu0 %v1594
  %v1596 = vpop.xlane.xlu0 %1595
  %v1597 = vsel %vm1035, %v1559, 0.0
  %1598 = vadd.xlane.f32.xlu0 %v1597
  %v1599 = vpop.xlane.xlu0 %1598
  %v1600 = vsel %vm1035, %v1560, 0.0
  %1601 = vadd.xlane.f32.xlu0 %v1600
  %v1602 = vpop.xlane.xlu0 %1601
  %v1603 = vsel %vm1035, %v1561, 0.0
  %1604 = vadd.xlane.f32.xlu0 %v1603
  %v1605 = vpop.xlane.xlu0 %1604
  %v1606 = vsel %vm1035, %v1562, 0.0
  %1607 = vadd.xlane.f32.xlu0 %v1606
  %v1608 = vpop.xlane.xlu0 %1607
  %v1609 = vsel %vm1035, %v1563, 0.0
  %1610 = vadd.xlane.f32.xlu0 %v1609
  %v1611 = vpop.xlane.xlu0 %1610
  %1628 = vrot.lane.b32.xlu0 %v908, 92
  %v1629 = vpop.permute.xlu0 %1628
  %1630 = vrot.lane.b32.xlu0 %v910, 92
  %v1631 = vpop.permute.xlu0 %1630
  %1632 = vrot.lane.b32.xlu0 %v913, 92
  %v1633 = vpop.permute.xlu0 %1632
  %1634 = vrot.lane.b32.xlu0 %v915, 92
  %v1635 = vpop.permute.xlu0 %1634
  %1636 = vrot.lane.b32.xlu0 %v918, 92
  %v1637 = vpop.permute.xlu0 %1636
  %1638 = vrot.lane.b32.xlu0 %v920, 92
  %v1639 = vpop.permute.xlu0 %1638
  %1640 = vrot.lane.b32.xlu0 %v923, 92
  %v1641 = vpop.permute.xlu0 %1640
  %1642 = vrot.lane.b32.xlu0 %v925, 92
  %v1643 = vpop.permute.xlu0 %1642
  %1644 = vrot.lane.b32.xlu0 %v928, 92
  %v1645 = vpop.permute.xlu0 %1644
  %1646 = vrot.lane.b32.xlu0 %v930, 92
  %v1647 = vpop.permute.xlu0 %1646
  %1648 = vrot.lane.b32.xlu0 %v933, 92
  %v1649 = vpop.permute.xlu0 %1648
  %1650 = vrot.lane.b32.xlu0 %v935, 92
  %v1651 = vpop.permute.xlu0 %1650
  %1652 = vrot.lane.b32.xlu0 %v938, 92
  %v1653 = vpop.permute.xlu0 %1652
  %1654 = vrot.lane.b32.xlu0 %v940, 92
  %v1655 = vpop.permute.xlu0 %1654
  %1656 = vrot.lane.b32.xlu0 %v943, 92
  %v1657 = vpop.permute.xlu0 %1656
  %1658 = vrot.lane.b32.xlu0 %v945, 92
  %v1659 = vpop.permute.xlu0 %1658
  %v1676 = vmul.f32 %v1516, %v1629
  %v1677 = vmul.f32 %v1517, %v1631
  %v1678 = vmul.f32 %v1518, %v1633
  %v1679 = vmul.f32 %v1519, %v1635
  %v1680 = vmul.f32 %v1520, %v1637
  %v1681 = vmul.f32 %v1521, %v1639
  %v1682 = vmul.f32 %v1522, %v1641
  %v1683 = vmul.f32 %v1523, %v1643
  %v1684 = vmul.f32 %v1524, %v1645
  %v1685 = vmul.f32 %v1525, %v1647
  %v1686 = vmul.f32 %v1526, %v1649
  %v1687 = vmul.f32 %v1527, %v1651
  %v1688 = vmul.f32 %v1528, %v1653
  %v1689 = vmul.f32 %v1529, %v1655
  %v1690 = vmul.f32 %v1530, %v1657
  %v1691 = vmul.f32 %v1531, %v1659
  %v1692 = vmax.f32 %v1340, %v1566
  %v1693 = vmax.f32 %v1341, %v1569
  %v1694 = vmax.f32 %v1342, %v1572
  %v1695 = vmax.f32 %v1343, %v1575
  %v1696 = vmax.f32 %v1344, %v1578
  %v1697 = vmax.f32 %v1345, %v1581
  %v1698 = vmax.f32 %v1346, %v1584
  %v1699 = vmax.f32 %v1347, %v1587
  %v1700 = vmax.f32 %v1348, %v1590
  %v1701 = vmax.f32 %v1349, %v1593
  %v1702 = vmax.f32 %v1350, %v1596
  %v1703 = vmax.f32 %v1351, %v1599
  %v1704 = vmax.f32 %v1352, %v1602
  %v1705 = vmax.f32 %v1353, %v1605
  %v1706 = vmax.f32 %v1354, %v1608
  %v1707 = vmax.f32 %v1355, %v1611
  %v1708 = vsub.f32 %v1340, %v1692
  %v1709 = vsub.f32 %v1341, %v1693
  %v1710 = vsub.f32 %v1342, %v1694
  %v1711 = vsub.f32 %v1343, %v1695
  %v1712 = vsub.f32 %v1344, %v1696
  %v1713 = vsub.f32 %v1345, %v1697
  %v1714 = vsub.f32 %v1346, %v1698
  %v1715 = vsub.f32 %v1347, %v1699
  %v1716 = vsub.f32 %v1348, %v1700
  %v1717 = vsub.f32 %v1349, %v1701
  %v1718 = vsub.f32 %v1350, %v1702
  %v1719 = vsub.f32 %v1351, %v1703
  %v1720 = vsub.f32 %v1352, %v1704
  %v1721 = vsub.f32 %v1353, %v1705
  %v1722 = vsub.f32 %v1354, %v1706
  %v1723 = vsub.f32 %v1355, %v1707
  %v1724 = vmul.f32 %v1708, 1.442695
  %v1725 = vpow.pop %v1724
  %v1726 = vmul.f32 %v1709, 1.442695
  %v1727 = vpow.pop %v1726
  %v1728 = vmul.f32 %v1710, 1.442695
  %v1729 = vpow.pop %v1728
  %v1730 = vmul.f32 %v1711, 1.442695
  %v1731 = vpow.pop %v1730
  %v1732 = vmul.f32 %v1712, 1.442695
  %v1733 = vpow.pop %v1732
  %v1734 = vmul.f32 %v1713, 1.442695
  %v1735 = vpow.pop %v1734
  %v1736 = vmul.f32 %v1714, 1.442695
  %v1737 = vpow.pop %v1736
  %v1738 = vmul.f32 %v1715, 1.442695
  %v1739 = vpow.pop %v1738
  %v1740 = vmul.f32 %v1716, 1.442695
  %v1741 = vpow.pop %v1740
  %v1742 = vmul.f32 %v1717, 1.442695
  %v1743 = vpow.pop %v1742
  %v1744 = vmul.f32 %v1718, 1.442695
  %v1745 = vpow.pop %v1744
  %v1746 = vmul.f32 %v1719, 1.442695
  %v1747 = vpow.pop %v1746
  %v1748 = vmul.f32 %v1720, 1.442695
  %v1749 = vpow.pop %v1748
  %v1750 = vmul.f32 %v1721, 1.442695
  %v1751 = vpow.pop %v1750
  %v1752 = vmul.f32 %v1722, 1.442695
  %v1753 = vpow.pop %v1752
  %v1754 = vmul.f32 %v1723, 1.442695
  %v1755 = vpow.pop %v1754
  %v1756 = vsub.f32 %v1566, %v1692
  %v1757 = vsub.f32 %v1569, %v1693
  %v1758 = vsub.f32 %v1572, %v1694
  %v1759 = vsub.f32 %v1575, %v1695
  %v1760 = vsub.f32 %v1578, %v1696
  %v1761 = vsub.f32 %v1581, %v1697
  %v1762 = vsub.f32 %v1584, %v1698
  %v1763 = vsub.f32 %v1587, %v1699
  %v1764 = vsub.f32 %v1590, %v1700
  %v1765 = vsub.f32 %v1593, %v1701
  %v1766 = vsub.f32 %v1596, %v1702
  %v1767 = vsub.f32 %v1599, %v1703
  %v1768 = vsub.f32 %v1602, %v1704
  %v1769 = vsub.f32 %v1605, %v1705
  %v1770 = vsub.f32 %v1608, %v1706
  %v1771 = vsub.f32 %v1611, %v1707
  %v1772 = vmul.f32 %v1756, 1.442695
  %v1773 = vpow.pop %v1772
  %v1774 = vmul.f32 %v1757, 1.442695
  %v1775 = vpow.pop %v1774
  %v1776 = vmul.f32 %v1758, 1.442695
  %v1777 = vpow.pop %v1776
  %v1778 = vmul.f32 %v1759, 1.442695
  %v1779 = vpow.pop %v1778
  %v1780 = vmul.f32 %v1760, 1.442695
  %v1781 = vpow.pop %v1780
  %v1782 = vmul.f32 %v1761, 1.442695
  %v1783 = vpow.pop %v1782
  %v1784 = vmul.f32 %v1762, 1.442695
  %v1785 = vpow.pop %v1784
  %v1786 = vmul.f32 %v1763, 1.442695
  %v1787 = vpow.pop %v1786
  %v1788 = vmul.f32 %v1764, 1.442695
  %v1789 = vpow.pop %v1788
  %v1790 = vmul.f32 %v1765, 1.442695
  %v1791 = vpow.pop %v1790
  %v1792 = vmul.f32 %v1766, 1.442695
  %v1793 = vpow.pop %v1792
  %v1794 = vmul.f32 %v1767, 1.442695
  %v1795 = vpow.pop %v1794
  %v1796 = vmul.f32 %v1768, 1.442695
  %v1797 = vpow.pop %v1796
  %v1798 = vmul.f32 %v1769, 1.442695
  %v1799 = vpow.pop %v1798
  %v1800 = vmul.f32 %v1770, 1.442695
  %v1801 = vpow.pop %v1800
  %v1802 = vmul.f32 %v1771, 1.442695
  %v1803 = vpow.pop %v1802
  %v1804 = vmul.f32 %v1725, %v1452
  %v1805 = vmul.f32 %v1727, %v1453
  %v1806 = vmul.f32 %v1729, %v1454
  %v1807 = vmul.f32 %v1731, %v1455
  %v1808 = vmul.f32 %v1733, %v1456
  %v1809 = vmul.f32 %v1735, %v1457
  %v1810 = vmul.f32 %v1737, %v1458
  %v1811 = vmul.f32 %v1739, %v1459
  %v1812 = vmul.f32 %v1741, %v1460
  %v1813 = vmul.f32 %v1743, %v1461
  %v1814 = vmul.f32 %v1745, %v1462
  %v1815 = vmul.f32 %v1747, %v1463
  %v1816 = vmul.f32 %v1749, %v1464
  %v1817 = vmul.f32 %v1751, %v1465
  %v1818 = vmul.f32 %v1753, %v1466
  %v1819 = vmul.f32 %v1755, %v1467
  %v1820 = vadd.f32 %v1804, %v1773
  %v1821 = vadd.f32 %v1805, %v1775
  %v1822 = vadd.f32 %v1806, %v1777
  %v1823 = vadd.f32 %v1807, %v1779
  %v1824 = vadd.f32 %v1808, %v1781
  %v1825 = vadd.f32 %v1809, %v1783
  %v1826 = vadd.f32 %v1810, %v1785
  %v1827 = vadd.f32 %v1811, %v1787
  %v1828 = vadd.f32 %v1812, %v1789
  %v1829 = vadd.f32 %v1813, %v1791
  %v1830 = vadd.f32 %v1814, %v1793
  %v1831 = vadd.f32 %v1815, %v1795
  %v1832 = vadd.f32 %v1816, %v1797
  %v1833 = vadd.f32 %v1817, %v1799
  %v1834 = vadd.f32 %v1818, %v1801
  %v1835 = vadd.f32 %v1819, %v1803
  %v1836 = vmul.f32 %v1725, %v1500
  %v1837 = vmul.f32 %v1727, %v1501
  %v1838 = vmul.f32 %v1729, %v1502
  %v1839 = vmul.f32 %v1731, %v1503
  %v1840 = vmul.f32 %v1733, %v1504
  %v1841 = vmul.f32 %v1735, %v1505
  %v1842 = vmul.f32 %v1737, %v1506
  %v1843 = vmul.f32 %v1739, %v1507
  %v1844 = vmul.f32 %v1741, %v1508
  %v1845 = vmul.f32 %v1743, %v1509
  %v1846 = vmul.f32 %v1745, %v1510
  %v1847 = vmul.f32 %v1747, %v1511
  %v1848 = vmul.f32 %v1749, %v1512
  %v1849 = vmul.f32 %v1751, %v1513
  %v1850 = vmul.f32 %v1753, %v1514
  %v1851 = vmul.f32 %v1755, %v1515
  %v1852 = vmul.f32 %v1773, %v1676
  %v1853 = vmul.f32 %v1775, %v1677
  %v1854 = vmul.f32 %v1777, %v1678
  %v1855 = vmul.f32 %v1779, %v1679
  %v1856 = vmul.f32 %v1781, %v1680
  %v1857 = vmul.f32 %v1783, %v1681
  %v1858 = vmul.f32 %v1785, %v1682
  %v1859 = vmul.f32 %v1787, %v1683
  %v1860 = vmul.f32 %v1789, %v1684
  %v1861 = vmul.f32 %v1791, %v1685
  %v1862 = vmul.f32 %v1793, %v1686
  %v1863 = vmul.f32 %v1795, %v1687
  %v1864 = vmul.f32 %v1797, %v1688
  %v1865 = vmul.f32 %v1799, %v1689
  %v1866 = vmul.f32 %v1801, %v1690
  %v1867 = vmul.f32 %v1803, %v1691
  %v1868 = vadd.f32 %v1836, %v1852
  %v1869 = vadd.f32 %v1837, %v1853
  %v1870 = vadd.f32 %v1838, %v1854
  %v1871 = vadd.f32 %v1839, %v1855
  %v1872 = vadd.f32 %v1840, %v1856
  %v1873 = vadd.f32 %v1841, %v1857
  %v1874 = vadd.f32 %v1842, %v1858
  %v1875 = vadd.f32 %v1843, %v1859
  %v1876 = vadd.f32 %v1844, %v1860
  %v1877 = vadd.f32 %v1845, %v1861
  %v1878 = vadd.f32 %v1846, %v1862
  %v1879 = vadd.f32 %v1847, %v1863
  %v1880 = vadd.f32 %v1848, %v1864
  %v1881 = vadd.f32 %v1849, %v1865
  %v1882 = vadd.f32 %v1850, %v1866
  %v1883 = vadd.f32 %v1851, %v1867
  %v1884 = vunpack.c.l.bf16 %v116
  %v1885 = vunpack.c.l.bf16 %v117
  %v1886 = vunpack.c.l.bf16 %v118
  %v1887 = vunpack.c.l.bf16 %v119
  %v1888 = vunpack.c.l.bf16 %v120
  %v1889 = vunpack.c.l.bf16 %v121
  %v1890 = vunpack.c.l.bf16 %v122
  %v1891 = vunpack.c.l.bf16 %v123
  %v1892 = vunpack.c.l.bf16 %v124
  %v1893 = vunpack.c.l.bf16 %v125
  %v1894 = vunpack.c.l.bf16 %v126
  %v1895 = vunpack.c.l.bf16 %v127
  %v1896 = vunpack.c.l.bf16 %v128
  %v1897 = vunpack.c.l.bf16 %v129
  %v1898 = vunpack.c.l.bf16 %v130
  %v1899 = vunpack.c.l.bf16 %v131
  %v1900 = vmul.f32 %v1884, %v948
  %v1901 = vmul.f32 %v1885, %v950
  %v1902 = vmul.f32 %v1886, %v953
  %v1903 = vmul.f32 %v1887, %v955
  %v1904 = vmul.f32 %v1888, %v958
  %v1905 = vmul.f32 %v1889, %v960
  %v1906 = vmul.f32 %v1890, %v963
  %v1907 = vmul.f32 %v1891, %v965
  %v1908 = vmul.f32 %v1892, %v968
  %v1909 = vmul.f32 %v1893, %v970
  %v1910 = vmul.f32 %v1894, %v973
  %v1911 = vmul.f32 %v1895, %v975
  %v1912 = vmul.f32 %v1896, %v978
  %v1913 = vmul.f32 %v1897, %v980
  %v1914 = vmul.f32 %v1898, %v983
  %v1915 = vmul.f32 %v1899, %v985
  %v1916 = vmul.f32 %v52, %v1900
  %v1917 = vmul.f32 %v53, %v1901
  %v1918 = vmul.f32 %v54, %v1902
  %v1919 = vmul.f32 %v55, %v1903
  %v1920 = vmul.f32 %v56, %v1904
  %v1921 = vmul.f32 %v57, %v1905
  %v1922 = vmul.f32 %v58, %v1906
  %v1923 = vmul.f32 %v59, %v1907
  %v1924 = vmul.f32 %v60, %v1908
  %v1925 = vmul.f32 %v61, %v1909
  %v1926 = vmul.f32 %v62, %v1910
  %v1927 = vmul.f32 %v63, %v1911
  %v1928 = vmul.f32 %v64, %v1912
  %v1929 = vmul.f32 %v65, %v1913
  %v1930 = vmul.f32 %v66, %v1914
  %v1931 = vmul.f32 %v67, %v1915
  %v1932 = vsel %vm1035, %v1916, 0.0
  %1933 = vadd.xlane.f32.xlu0 %v1932
  %v1934 = vpop.xlane.xlu0 %1933
  %v1935 = vsel %vm1035, %v1917, 0.0
  %1936 = vadd.xlane.f32.xlu0 %v1935
  %v1937 = vpop.xlane.xlu0 %1936
  %v1938 = vsel %vm1035, %v1918, 0.0
  %1939 = vadd.xlane.f32.xlu0 %v1938
  %v1940 = vpop.xlane.xlu0 %1939
  %v1941 = vsel %vm1035, %v1919, 0.0
  %1942 = vadd.xlane.f32.xlu0 %v1941
  %v1943 = vpop.xlane.xlu0 %1942
  %v1944 = vsel %vm1035, %v1920, 0.0
  %1945 = vadd.xlane.f32.xlu0 %v1944
  %v1946 = vpop.xlane.xlu0 %1945
  %v1947 = vsel %vm1035, %v1921, 0.0
  %1948 = vadd.xlane.f32.xlu0 %v1947
  %v1949 = vpop.xlane.xlu0 %1948
  %v1950 = vsel %vm1035, %v1922, 0.0
  %1951 = vadd.xlane.f32.xlu0 %v1950
  %v1952 = vpop.xlane.xlu0 %1951
  %v1953 = vsel %vm1035, %v1923, 0.0
  %1954 = vadd.xlane.f32.xlu0 %v1953
  %v1955 = vpop.xlane.xlu0 %1954
  %v1956 = vsel %vm1035, %v1924, 0.0
  %1957 = vadd.xlane.f32.xlu0 %v1956
  %v1958 = vpop.xlane.xlu0 %1957
  %v1959 = vsel %vm1035, %v1925, 0.0
  %1960 = vadd.xlane.f32.xlu0 %v1959
  %v1961 = vpop.xlane.xlu0 %1960
  %v1962 = vsel %vm1035, %v1926, 0.0
  %1963 = vadd.xlane.f32.xlu0 %v1962
  %v1964 = vpop.xlane.xlu0 %1963
  %v1965 = vsel %vm1035, %v1927, 0.0
  %1966 = vadd.xlane.f32.xlu0 %v1965
  %v1967 = vpop.xlane.xlu0 %1966
  %v1968 = vsel %vm1035, %v1928, 0.0
  %1969 = vadd.xlane.f32.xlu0 %v1968
  %v1970 = vpop.xlane.xlu0 %1969
  %v1971 = vsel %vm1035, %v1929, 0.0
  %1972 = vadd.xlane.f32.xlu0 %v1971
  %v1973 = vpop.xlane.xlu0 %1972
  %v1974 = vsel %vm1035, %v1930, 0.0
  %1975 = vadd.xlane.f32.xlu0 %v1974
  %v1976 = vpop.xlane.xlu0 %1975
  %v1977 = vsel %vm1035, %v1931, 0.0
  %1978 = vadd.xlane.f32.xlu0 %v1977
  %v1979 = vpop.xlane.xlu0 %1978
  %1996 = vrot.lane.b32.xlu0 %v948, 92
  %v1997 = vpop.permute.xlu0 %1996
  %1998 = vrot.lane.b32.xlu0 %v950, 92
  %v1999 = vpop.permute.xlu0 %1998
  %2000 = vrot.lane.b32.xlu0 %v953, 92
  %v2001 = vpop.permute.xlu0 %2000
  %2002 = vrot.lane.b32.xlu0 %v955, 92
  %v2003 = vpop.permute.xlu0 %2002
  %2004 = vrot.lane.b32.xlu0 %v958, 92
  %v2005 = vpop.permute.xlu0 %2004
  %2006 = vrot.lane.b32.xlu0 %v960, 92
  %v2007 = vpop.permute.xlu0 %2006
  %2008 = vrot.lane.b32.xlu0 %v963, 92
  %v2009 = vpop.permute.xlu0 %2008
  %2010 = vrot.lane.b32.xlu0 %v965, 92
  %v2011 = vpop.permute.xlu0 %2010
  %2012 = vrot.lane.b32.xlu0 %v968, 92
  %v2013 = vpop.permute.xlu0 %2012
  %2014 = vrot.lane.b32.xlu0 %v970, 92
  %v2015 = vpop.permute.xlu0 %2014
  %2016 = vrot.lane.b32.xlu0 %v973, 92
  %v2017 = vpop.permute.xlu0 %2016
  %2018 = vrot.lane.b32.xlu0 %v975, 92
  %v2019 = vpop.permute.xlu0 %2018
  %2020 = vrot.lane.b32.xlu0 %v978, 92
  %v2021 = vpop.permute.xlu0 %2020
  %2022 = vrot.lane.b32.xlu0 %v980, 92
  %v2023 = vpop.permute.xlu0 %2022
  %2024 = vrot.lane.b32.xlu0 %v983, 92
  %v2025 = vpop.permute.xlu0 %2024
  %2026 = vrot.lane.b32.xlu0 %v985, 92
  %v2027 = vpop.permute.xlu0 %2026
  %v2044 = vmul.f32 %v1884, %v1997
  %v2045 = vmul.f32 %v1885, %v1999
  %v2046 = vmul.f32 %v1886, %v2001
  %v2047 = vmul.f32 %v1887, %v2003
  %v2048 = vmul.f32 %v1888, %v2005
  %v2049 = vmul.f32 %v1889, %v2007
  %v2050 = vmul.f32 %v1890, %v2009
  %v2051 = vmul.f32 %v1891, %v2011
  %v2052 = vmul.f32 %v1892, %v2013
  %v2053 = vmul.f32 %v1893, %v2015
  %v2054 = vmul.f32 %v1894, %v2017
  %v2055 = vmul.f32 %v1895, %v2019
  %v2056 = vmul.f32 %v1896, %v2021
  %v2057 = vmul.f32 %v1897, %v2023
  %v2058 = vmul.f32 %v1898, %v2025
  %v2059 = vmul.f32 %v1899, %v2027
  %v2060 = vmax.f32 %v1692, %v1934
  %v2061 = vmax.f32 %v1693, %v1937
  %v2062 = vmax.f32 %v1694, %v1940
  %v2063 = vmax.f32 %v1695, %v1943
  %v2064 = vmax.f32 %v1696, %v1946
  %v2065 = vmax.f32 %v1697, %v1949
  %v2066 = vmax.f32 %v1698, %v1952
  %v2067 = vmax.f32 %v1699, %v1955
  %v2068 = vmax.f32 %v1700, %v1958
  %v2069 = vmax.f32 %v1701, %v1961
  %v2070 = vmax.f32 %v1702, %v1964
  %v2071 = vmax.f32 %v1703, %v1967
  %v2072 = vmax.f32 %v1704, %v1970
  %v2073 = vmax.f32 %v1705, %v1973
  %v2074 = vmax.f32 %v1706, %v1976
  %v2075 = vmax.f32 %v1707, %v1979
  %v2076 = vsub.f32 %v1692, %v2060
  %v2077 = vsub.f32 %v1693, %v2061
  %v2078 = vsub.f32 %v1694, %v2062
  %v2079 = vsub.f32 %v1695, %v2063
  %v2080 = vsub.f32 %v1696, %v2064
  %v2081 = vsub.f32 %v1697, %v2065
  %v2082 = vsub.f32 %v1698, %v2066
  %v2083 = vsub.f32 %v1699, %v2067
  %v2084 = vsub.f32 %v1700, %v2068
  %v2085 = vsub.f32 %v1701, %v2069
  %v2086 = vsub.f32 %v1702, %v2070
  %v2087 = vsub.f32 %v1703, %v2071
  %v2088 = vsub.f32 %v1704, %v2072
  %v2089 = vsub.f32 %v1705, %v2073
  %v2090 = vsub.f32 %v1706, %v2074
  %v2091 = vsub.f32 %v1707, %v2075
  %v2092 = vmul.f32 %v2076, 1.442695
  %v2093 = vpow.pop %v2092
  %v2094 = vmul.f32 %v2077, 1.442695
  %v2095 = vpow.pop %v2094
  %v2096 = vmul.f32 %v2078, 1.442695
  %v2097 = vpow.pop %v2096
  %v2098 = vmul.f32 %v2079, 1.442695
  %v2099 = vpow.pop %v2098
  %v2100 = vmul.f32 %v2080, 1.442695
  %v2101 = vpow.pop %v2100
  %v2102 = vmul.f32 %v2081, 1.442695
  %v2103 = vpow.pop %v2102
  %v2104 = vmul.f32 %v2082, 1.442695
  %v2105 = vpow.pop %v2104
  %v2106 = vmul.f32 %v2083, 1.442695
  %v2107 = vpow.pop %v2106
  %v2108 = vmul.f32 %v2084, 1.442695
  %v2109 = vpow.pop %v2108
  %v2110 = vmul.f32 %v2085, 1.442695
  %v2111 = vpow.pop %v2110
  %v2112 = vmul.f32 %v2086, 1.442695
  %v2113 = vpow.pop %v2112
  %v2114 = vmul.f32 %v2087, 1.442695
  %v2115 = vpow.pop %v2114
  %v2116 = vmul.f32 %v2088, 1.442695
  %v2117 = vpow.pop %v2116
  %v2118 = vmul.f32 %v2089, 1.442695
  %v2119 = vpow.pop %v2118
  %v2120 = vmul.f32 %v2090, 1.442695
  %v2121 = vpow.pop %v2120
  %v2122 = vmul.f32 %v2091, 1.442695
  %v2123 = vpow.pop %v2122
  %v2124 = vsub.f32 %v1934, %v2060
  %v2125 = vsub.f32 %v1937, %v2061
  %v2126 = vsub.f32 %v1940, %v2062
  %v2127 = vsub.f32 %v1943, %v2063
  %v2128 = vsub.f32 %v1946, %v2064
  %v2129 = vsub.f32 %v1949, %v2065
  %v2130 = vsub.f32 %v1952, %v2066
  %v2131 = vsub.f32 %v1955, %v2067
  %v2132 = vsub.f32 %v1958, %v2068
  %v2133 = vsub.f32 %v1961, %v2069
  %v2134 = vsub.f32 %v1964, %v2070
  %v2135 = vsub.f32 %v1967, %v2071
  %v2136 = vsub.f32 %v1970, %v2072
  %v2137 = vsub.f32 %v1973, %v2073
  %v2138 = vsub.f32 %v1976, %v2074
  %v2139 = vsub.f32 %v1979, %v2075
  %v2140 = vmul.f32 %v2124, 1.442695
  %v2141 = vpow.pop %v2140
  %v2142 = vmul.f32 %v2125, 1.442695
  %v2143 = vpow.pop %v2142
  %v2144 = vmul.f32 %v2126, 1.442695
  %v2145 = vpow.pop %v2144
  %v2146 = vmul.f32 %v2127, 1.442695
  %v2147 = vpow.pop %v2146
  %v2148 = vmul.f32 %v2128, 1.442695
  %v2149 = vpow.pop %v2148
  %v2150 = vmul.f32 %v2129, 1.442695
  %v2151 = vpow.pop %v2150
  %v2152 = vmul.f32 %v2130, 1.442695
  %v2153 = vpow.pop %v2152
  %v2154 = vmul.f32 %v2131, 1.442695
  %v2155 = vpow.pop %v2154
  %v2156 = vmul.f32 %v2132, 1.442695
  %v2157 = vpow.pop %v2156
  %v2158 = vmul.f32 %v2133, 1.442695
  %v2159 = vpow.pop %v2158
  %v2160 = vmul.f32 %v2134, 1.442695
  %v2161 = vpow.pop %v2160
  %v2162 = vmul.f32 %v2135, 1.442695
  %v2163 = vpow.pop %v2162
  %v2164 = vmul.f32 %v2136, 1.442695
  %v2165 = vpow.pop %v2164
  %v2166 = vmul.f32 %v2137, 1.442695
  %v2167 = vpow.pop %v2166
  %v2168 = vmul.f32 %v2138, 1.442695
  %v2169 = vpow.pop %v2168
  %v2170 = vmul.f32 %v2139, 1.442695
  %v2171 = vpow.pop %v2170
  %v2172 = vmul.f32 %v2093, %v1820
  %v2173 = vmul.f32 %v2095, %v1821
  %v2174 = vmul.f32 %v2097, %v1822
  %v2175 = vmul.f32 %v2099, %v1823
  %v2176 = vmul.f32 %v2101, %v1824
  %v2177 = vmul.f32 %v2103, %v1825
  %v2178 = vmul.f32 %v2105, %v1826
  %v2179 = vmul.f32 %v2107, %v1827
  %v2180 = vmul.f32 %v2109, %v1828
  %v2181 = vmul.f32 %v2111, %v1829
  %v2182 = vmul.f32 %v2113, %v1830
  %v2183 = vmul.f32 %v2115, %v1831
  %v2184 = vmul.f32 %v2117, %v1832
  %v2185 = vmul.f32 %v2119, %v1833
  %v2186 = vmul.f32 %v2121, %v1834
  %v2187 = vmul.f32 %v2123, %v1835
  %v2188 = vadd.f32 %v2172, %v2141
  %v2189 = vadd.f32 %v2173, %v2143
  %v2190 = vadd.f32 %v2174, %v2145
  %v2191 = vadd.f32 %v2175, %v2147
  %v2192 = vadd.f32 %v2176, %v2149
  %v2193 = vadd.f32 %v2177, %v2151
  %v2194 = vadd.f32 %v2178, %v2153
  %v2195 = vadd.f32 %v2179, %v2155
  %v2196 = vadd.f32 %v2180, %v2157
  %v2197 = vadd.f32 %v2181, %v2159
  %v2198 = vadd.f32 %v2182, %v2161
  %v2199 = vadd.f32 %v2183, %v2163
  %v2200 = vadd.f32 %v2184, %v2165
  %v2201 = vadd.f32 %v2185, %v2167
  %v2202 = vadd.f32 %v2186, %v2169
  %v2203 = vadd.f32 %v2187, %v2171
  %v2204 = vmul.f32 %v2093, %v1868
  %v2205 = vmul.f32 %v2095, %v1869
  %v2206 = vmul.f32 %v2097, %v1870
  %v2207 = vmul.f32 %v2099, %v1871
  %v2208 = vmul.f32 %v2101, %v1872
  %v2209 = vmul.f32 %v2103, %v1873
  %v2210 = vmul.f32 %v2105, %v1874
  %v2211 = vmul.f32 %v2107, %v1875
  %v2212 = vmul.f32 %v2109, %v1876
  %v2213 = vmul.f32 %v2111, %v1877
  %v2214 = vmul.f32 %v2113, %v1878
  %v2215 = vmul.f32 %v2115, %v1879
  %v2216 = vmul.f32 %v2117, %v1880
  %v2217 = vmul.f32 %v2119, %v1881
  %v2218 = vmul.f32 %v2121, %v1882
  %v2219 = vmul.f32 %v2123, %v1883
  %v2220 = vmul.f32 %v2141, %v2044
  %v2221 = vmul.f32 %v2143, %v2045
  %v2222 = vmul.f32 %v2145, %v2046
  %v2223 = vmul.f32 %v2147, %v2047
  %v2224 = vmul.f32 %v2149, %v2048
  %v2225 = vmul.f32 %v2151, %v2049
  %v2226 = vmul.f32 %v2153, %v2050
  %v2227 = vmul.f32 %v2155, %v2051
  %v2228 = vmul.f32 %v2157, %v2052
  %v2229 = vmul.f32 %v2159, %v2053
  %v2230 = vmul.f32 %v2161, %v2054
  %v2231 = vmul.f32 %v2163, %v2055
  %v2232 = vmul.f32 %v2165, %v2056
  %v2233 = vmul.f32 %v2167, %v2057
  %v2234 = vmul.f32 %v2169, %v2058
  %v2235 = vmul.f32 %v2171, %v2059
  %v2236 = vadd.f32 %v2204, %v2220
  %v2237 = vadd.f32 %v2205, %v2221
  %v2238 = vadd.f32 %v2206, %v2222
  %v2239 = vadd.f32 %v2207, %v2223
  %v2240 = vadd.f32 %v2208, %v2224
  %v2241 = vadd.f32 %v2209, %v2225
  %v2242 = vadd.f32 %v2210, %v2226
  %v2243 = vadd.f32 %v2211, %v2227
  %v2244 = vadd.f32 %v2212, %v2228
  %v2245 = vadd.f32 %v2213, %v2229
  %v2246 = vadd.f32 %v2214, %v2230
  %v2247 = vadd.f32 %v2215, %v2231
  %v2248 = vadd.f32 %v2216, %v2232
  %v2249 = vadd.f32 %v2217, %v2233
  %v2250 = vadd.f32 %v2218, %v2234
  %v2251 = vadd.f32 %v2219, %v2235
  %v2252 = vrcp.pop %v2188
  %v2253 = vrcp.pop %v2189
  %v2254 = vrcp.pop %v2190
  %v2255 = vrcp.pop %v2191
  %v2256 = vrcp.pop %v2192
  %v2257 = vrcp.pop %v2193
  %v2258 = vrcp.pop %v2194
  %v2259 = vrcp.pop %v2195
  %v2260 = vrcp.pop %v2196
  %v2261 = vrcp.pop %v2197
  %v2262 = vrcp.pop %v2198
  %v2263 = vrcp.pop %v2199
  %v2264 = vrcp.pop %v2200
  %v2265 = vrcp.pop %v2201
  %v2266 = vrcp.pop %v2202
  %v2267 = vrcp.pop %v2203
  %v2268 = vmul.f32 %v2236, %v2252
  %v2269 = vmul.f32 %v2237, %v2253
  %v2270 = vmul.f32 %v2238, %v2254
  %v2271 = vmul.f32 %v2239, %v2255
  %v2272 = vmul.f32 %v2240, %v2256
  %v2273 = vmul.f32 %v2241, %v2257
  %v2274 = vmul.f32 %v2242, %v2258
  %v2275 = vmul.f32 %v2243, %v2259
  %v2276 = vmul.f32 %v2244, %v2260
  %v2277 = vmul.f32 %v2245, %v2261
  %v2278 = vmul.f32 %v2246, %v2262
  %v2279 = vmul.f32 %v2247, %v2263
  %v2280 = vmul.f32 %v2248, %v2264
  %v2281 = vmul.f32 %v2249, %v2265
  %v2282 = vmul.f32 %v2250, %v2266
  %v2283 = vmul.f32 %v2251, %v2267
  %v2284 = vpack.c.bf16 %v2269, %v2268
  %v2285 = vpack.c.bf16 %v2271, %v2270
  %v2286 = vpack.c.bf16 %v2273, %v2272
  %v2287 = vpack.c.bf16 %v2275, %v2274
  %v2288 = vpack.c.bf16 %v2277, %v2276
  %v2289 = vpack.c.bf16 %v2279, %v2278
  %v2290 = vpack.c.bf16 %v2281, %v2280
  %v2291 = vpack.c.bf16 %v2283, %v2282
  %v2292 = vld [vmem:[%s6] sm:$0xf]
  %v2293 = vld [vmem:[%s6 + $0x4] sm:$0xf]
  %v2294 = vld [vmem:[%s6 + $0x8] sm:$0xf]
  %v2295 = vld [vmem:[%s6 + $0xc] sm:$0xf]
  %v2296 = vld [vmem:[%s6 + $0x10] sm:$0xf]
  %v2297 = vld [vmem:[%s7] sm:$0x1]
  %v2299 = vperm.slane %v2297, 0
  %v2306 = vunpack.c.l.b16 %v2292
  %v2307 = vunpack.c.l.b16 %v2293
  %v2308 = vunpack.c.l.b16 %v2294
  %v2309 = vunpack.c.l.b16 %v2295
  %v2310 = vunpack.c.l.b16 %v2296
  %v2311 = vpack.c.b16 %v2307, %v2306
  %v2312 = vpack.c.b16 %v2309, %v2308
  %v2313 = vpack.c.b16 %v2310, %v2310
  %vm2316 = vcmask 326656
  %v2318 = vsel %vm2316, %v2284, 0
  %v2321 = vsel %vm2316, %v2285, 0
  %v2324 = vsel %vm2316, %v2286, 0
  %v2327 = vsel %vm2316, %v2287, 0
  %v2330 = vsel %vm2316, %v2288, 0
  %v2333 = vsel %vm2316, %v2289, 0
  %v2336 = vsel %vm2316, %v2290, 0
  %v2339 = vsel %vm2316, %v2291, 0
  %vm2341 = vcmask 1043456
  %v2343 = vsel %vm2341, %v2313, 0
  %2345 = vmatpush.bf16.msra.mxu0 0
  %2346 = vmatpush.bf16.msra.mxu0 0
  %2347 = vmatpush.bf16.msra.mxu0 0
  %2348 = vmatpush.bf16.msra.mxu0 0
  %2349 = vmatpush.bf16.msra.mxu0 0
  %2350 = vmatpush.bf16.msra.mxu0 %v2343
  %2351 = vmatpush.bf16.msra.mxu0 %v2312
  %2352 = vmatpush.bf16.msra.mxu0 %v2311
  %2353 = vmatmul.bf16.gmra.mxu0 %v2318
  %v2354 = vpop.f32.mrf.mxu0
  %v2355 = vadd.f32 %v2299, %v2354
  %v2356 = vpop.f32.mrf.mxu0
  %v2357 = vadd.f32 %v2299, %v2356
  %2358 = vmatmul.bf16.gmra.mxu0 %v2321
  %v2359 = vpop.f32.mrf.mxu0
  %v2360 = vadd.f32 %v2299, %v2359
  %v2361 = vpop.f32.mrf.mxu0
  %v2362 = vadd.f32 %v2299, %v2361
  %2363 = vmatmul.bf16.gmra.mxu0 %v2324
  %v2364 = vpop.f32.mrf.mxu0
  %v2365 = vadd.f32 %v2299, %v2364
  %v2366 = vpop.f32.mrf.mxu0
  %v2367 = vadd.f32 %v2299, %v2366
  %2368 = vmatmul.bf16.gmra.mxu0 %v2327
  %v2369 = vpop.f32.mrf.mxu0
  %v2370 = vadd.f32 %v2299, %v2369
  %v2371 = vpop.f32.mrf.mxu0
  %v2372 = vadd.f32 %v2299, %v2371
  %2373 = vmatmul.bf16.gmra.mxu0 %v2330
  %v2374 = vpop.f32.mrf.mxu0
  %v2375 = vadd.f32 %v2299, %v2374
  %v2376 = vpop.f32.mrf.mxu0
  %v2377 = vadd.f32 %v2299, %v2376
  %2378 = vmatmul.bf16.gmra.mxu0 %v2333
  %v2379 = vpop.f32.mrf.mxu0
  %v2380 = vadd.f32 %v2299, %v2379
  %v2381 = vpop.f32.mrf.mxu0
  %v2382 = vadd.f32 %v2299, %v2381
  %2383 = vmatmul.bf16.gmra.mxu0 %v2336
  %v2384 = vpop.f32.mrf.mxu0
  %v2385 = vadd.f32 %v2299, %v2384
  %v2386 = vpop.f32.mrf.mxu0
  %v2387 = vadd.f32 %v2299, %v2386
  %2388 = vmatmul.bf16.gmra.mxu0 %v2339
  %v2389 = vpop.f32.mrf.mxu0
  %v2390 = vadd.f32 %v2299, %v2389
  %v2391 = vpop.f32.mrf.mxu0
  %v2392 = vadd.f32 %v2299, %v2391
  %2393 = vdwg.mxu0
  %v2394 = vmax.f32 %v2355, 0.0
  %v2395 = vmax.f32 %v2357, 0.0
  %v2396 = vmax.f32 %v2360, 0.0
  %v2397 = vmax.f32 %v2362, 0.0
  %v2398 = vmax.f32 %v2365, 0.0
  %v2399 = vmax.f32 %v2367, 0.0
  %v2400 = vmax.f32 %v2370, 0.0
  %v2401 = vmax.f32 %v2372, 0.0
  %v2402 = vmax.f32 %v2375, 0.0
  %v2403 = vmax.f32 %v2377, 0.0
  %v2404 = vmax.f32 %v2380, 0.0
  %v2405 = vmax.f32 %v2382, 0.0
  %v2406 = vmax.f32 %v2385, 0.0
  %v2407 = vmax.f32 %v2387, 0.0
  %v2408 = vmax.f32 %v2390, 0.0
  %v2409 = vmax.f32 %v2392, 0.0
  %v2410 = vpack.c.bf16 %v2395, %v2394
  %v2411 = vpack.c.bf16 %v2397, %v2396
  %v2412 = vpack.c.bf16 %v2399, %v2398
  %v2413 = vpack.c.bf16 %v2401, %v2400
  %v2414 = vpack.c.bf16 %v2403, %v2402
  %v2415 = vpack.c.bf16 %v2405, %v2404
  %v2416 = vpack.c.bf16 %v2407, %v2406
  %v2417 = vpack.c.bf16 %v2409, %v2408
  %v2418 = vld [vmem:[%s8] sm:$0xf]
  %v2419 = vld [vmem:[%s8 + $0x4] sm:$0xf]
  %v2420 = vld [vmem:[%s8 + $0x8] sm:$0xf]
  %v2421 = vld [vmem:[%s8 + $0xc] sm:$0xf]
  %v2422 = vld [vmem:[%s9] sm:$0x1]
  %v2424 = vperm.slane %v2422, 0
  %v2430 = vunpack.c.l.b16 %v2418
  %v2431 = vunpack.c.l.b16 %v2419
  %v2432 = vunpack.c.l.b16 %v2420
  %v2433 = vunpack.c.l.b16 %v2421
  %v2434 = vpack.c.b16 %v2431, %v2430
  %v2435 = vpack.c.b16 %v2433, %v2432
  %vm2438 = vcmask 261120
  %v2440 = vsel %vm2438, %v2410, 0
  %v2443 = vsel %vm2438, %v2411, 0
  %v2446 = vsel %vm2438, %v2412, 0
  %v2449 = vsel %vm2438, %v2413, 0
  %v2452 = vsel %vm2438, %v2414, 0
  %v2455 = vsel %vm2438, %v2415, 0
  %v2458 = vsel %vm2438, %v2416, 0
  %v2461 = vsel %vm2438, %v2417, 0
  %2463 = vmatpush.bf16.msra.mxu0 0
  %2464 = vmatpush.bf16.msra.mxu0 0
  %2465 = vmatpush.bf16.msra.mxu0 0
  %2466 = vmatpush.bf16.msra.mxu0 0
  %2467 = vmatpush.bf16.msra.mxu0 0
  %2468 = vmatpush.bf16.msra.mxu0 0
  %2469 = vmatpush.bf16.msra.mxu0 %v2435
  %2470 = vmatpush.bf16.msra.mxu0 %v2434
  %2471 = vmatmul.bf16.gmra.mxu0 %v2440
  %v2472 = vpop.f32.mrf.mxu0
  %v2473 = vadd.f32 %v2424, %v2472
  %v2474 = vpop.f32.mrf.mxu0
  %v2475 = vadd.f32 %v2424, %v2474
  %2476 = vmatmul.bf16.gmra.mxu0 %v2443
  %v2477 = vpop.f32.mrf.mxu0
  %v2478 = vadd.f32 %v2424, %v2477
  %v2479 = vpop.f32.mrf.mxu0
  %v2480 = vadd.f32 %v2424, %v2479
  %2481 = vmatmul.bf16.gmra.mxu0 %v2446
  %v2482 = vpop.f32.mrf.mxu0
  %v2483 = vadd.f32 %v2424, %v2482
  %v2484 = vpop.f32.mrf.mxu0
  %v2485 = vadd.f32 %v2424, %v2484
  %2486 = vmatmul.bf16.gmra.mxu0 %v2449
  %v2487 = vpop.f32.mrf.mxu0
  %v2488 = vadd.f32 %v2424, %v2487
  %v2489 = vpop.f32.mrf.mxu0
  %v2490 = vadd.f32 %v2424, %v2489
  %2491 = vmatmul.bf16.gmra.mxu0 %v2452
  %v2492 = vpop.f32.mrf.mxu0
  %v2493 = vadd.f32 %v2424, %v2492
  %v2494 = vpop.f32.mrf.mxu0
  %v2495 = vadd.f32 %v2424, %v2494
  %2496 = vmatmul.bf16.gmra.mxu0 %v2455
  %v2497 = vpop.f32.mrf.mxu0
  %v2498 = vadd.f32 %v2424, %v2497
  %v2499 = vpop.f32.mrf.mxu0
  %v2500 = vadd.f32 %v2424, %v2499
  %2501 = vmatmul.bf16.gmra.mxu0 %v2458
  %v2502 = vpop.f32.mrf.mxu0
  %v2503 = vadd.f32 %v2424, %v2502
  %v2504 = vpop.f32.mrf.mxu0
  %v2505 = vadd.f32 %v2424, %v2504
  %2506 = vmatmul.bf16.gmra.mxu0 %v2461
  %v2507 = vpop.f32.mrf.mxu0
  %v2508 = vadd.f32 %v2424, %v2507
  %v2509 = vpop.f32.mrf.mxu0
  %v2510 = vadd.f32 %v2424, %v2509
  %2511 = vdwg.mxu0
  %vm2512 = vcmask 23552
  %2513 = vst.msk [vmem:[%s10] sm:$0xff] %vm2512, %v2473
  %2514 = vst.msk [vmem:[%s10 + $0x8] sm:$0xff] %vm2512, %v2475
  %2515 = vst.msk [vmem:[%s10 + $0x10] sm:$0xff] %vm2512, %v2478
  %2516 = vst.msk [vmem:[%s10 + $0x18] sm:$0xff] %vm2512, %v2480
  %2517 = vst.msk [vmem:[%s10 + $0x20] sm:$0xff] %vm2512, %v2483
  %2518 = vst.msk [vmem:[%s10 + $0x28] sm:$0xff] %vm2512, %v2485
  %2519 = vst.msk [vmem:[%s10 + $0x30] sm:$0xff] %vm2512, %v2488
  %2520 = vst.msk [vmem:[%s10 + $0x38] sm:$0xff] %vm2512, %v2490
  %2521 = vst.msk [vmem:[%s10 + $0x40] sm:$0xff] %vm2512, %v2493
  %2522 = vst.msk [vmem:[%s10 + $0x48] sm:$0xff] %vm2512, %v2495
  %2523 = vst.msk [vmem:[%s10 + $0x50] sm:$0xff] %vm2512, %v2498
  %2524 = vst.msk [vmem:[%s10 + $0x58] sm:$0xff] %vm2512, %v2500
  %2525 = vst.msk [vmem:[%s10 + $0x60] sm:$0xff] %vm2512, %v2503
  %2526 = vst.msk [vmem:[%s10 + $0x68] sm:$0xff] %vm2512, %v2505
  %2527 = vst.msk [vmem:[%s10 + $0x70] sm:$0xff] %vm2512, %v2508
  %2528 = vst.msk [vmem:[%s10 + $0x78] sm:$0xff] %vm2512, %v2510
  // Predicated region
  $region42: #{mcassr_forward.1} parent=0 // pred_check
    _
  $region43: #{mcassr_forward.1} parent=0 // pred_check_branch
    %2530 = sbr.rel (0) target = $region45
  $region44: #{mcassr_forward.1} parent=0 // pred_region
    _
  $region45: #{mcassr_forward.1} parent=0 // pred_fallthru
    _
  // Predicated region
  $region46: #{mcassr_forward.1} parent=0 // pred_check
    _
  $region47: #{mcassr_forward.1} parent=0 // pred_check_branch
    %2532 = sbr.rel (0) target = $region49
  $region48: #{mcassr_forward.1} parent=0 // pred_region
    _
  $region49: #{mcassr_forward.1} parent=0 // pred_fallthru
    _

</llo_original>
